<compile_context>
chip_gen: v6e
topology: v6e:2x2x1
jax: 0.10.0
libtpu: 0.0.40
codegen_flags: <defaults>
</compile_context>

<pallas_src>
import functools

import jax
import jax.numpy as jnp
from jax.experimental import pallas as pl
from jax.experimental.pallas import tpu as pltpu


# ---------------------------------------------------------------------------
# Kernel
# ---------------------------------------------------------------------------

def _layernorm(z, gamma, beta, eps=1e-5):
    mu = jnp.mean(z, axis=-1, keepdims=True)
    var = jnp.mean((z - mu) ** 2, axis=-1, keepdims=True)
    return (z - mu) * jax.lax.rsqrt(var + eps) * gamma + beta


def _fgpt_kernel(x_ref,
                 wp_ref, bp_ref, ww_ref, bw_ref, g1_ref, be1_ref,
                 w1_ref, b1_ref, w2_ref, b2_ref, g2_ref, be2_ref,
                 gf_ref, bf_ref,
                 sr_ref, bh_ref, ew_ref, ar_ref,
                 o_ref,
                 *, num_heads, d_k, d_v, n_layer):
    """Whole FGPT forward for one (tm, D) token tile.

    All per-layer weights are VMEM-resident (constant index maps); the layer
    loop runs inside the kernel, and the final LayerNorm is fused before the
    single output store.
    """
    H = num_heads
    P = H * H                    # (key head g, query head h) pairs, p = g*H + h
    PK = P * d_k
    PV = P * d_v

    # Tiny constant one-hot matrices (exact in bf16), hoisted out of the loop.
    sr = sr_ref[...]             # (P*d_k, P)     per-pair segment sum of q*k
    bh = bh_ref[...]             # (H, P)         broadcast per-query-head -> pairs
    ew = ew_ref[...]             # (P, P*d_v)     repeat pair weight d_v times
    ar = ar_ref[...]             # (P*d_v, H*d_v) reduce over key heads

    def layer_body(l, x):
        x_bf = x.astype(jnp.bfloat16)

        # Fused projection: one MXU push yields [qe | ke | ve] with the head
        # pair expansion already folded into the weights; each chunk is
        # 128-lane aligned (P*d_k = P*d_v = 128 at H=4, d=8).
        proj = jnp.dot(x_bf, wp_ref[l],
                       preferred_element_type=jnp.float32) + bp_ref[l]
        qe = proj[:, :PK]               # qe[t, p*dk+d] = q_scaled[t, h(p), d]
        ke = proj[:, PK:2 * PK]         # ke[t, p*dk+d] = k[t, g(p), d]
        ve = proj[:, 2 * PK:]           # ve[t, p*dv+j] = v[t, g(p), j]

        # Per-token head-attention scores for all (h, g) pairs at once.
        s = jnp.dot((qe * ke).astype(jnp.bfloat16), sr,
                    preferred_element_type=jnp.float32)           # (TM, P)

        # Softmax over key heads g for each query head h (pair index g*H + h).
        m = s[:, 0:H]
        for g in range(1, H):
            m = jnp.maximum(m, s[:, g * H:(g + 1) * H])           # (TM, H)
        mb = jnp.dot(m.astype(jnp.bfloat16), bh,
                     preferred_element_type=jnp.float32)          # (TM, P)
        w = jnp.exp(s - mb)                                       # (TM, P)
        denom = w[:, 0:H]
        for g in range(1, H):
            denom = denom + w[:, g * H:(g + 1) * H]               # (TM, H)
        # approx reciprocal deviates ~1e-3 from exact softmax; fine at 5e-2 tol
        inv = pl.reciprocal(denom, approx=True)
        wn = w * jnp.dot(inv.astype(jnp.bfloat16), bh,
                         preferred_element_type=jnp.float32)      # normalized

        # att[t, h*dv + j] = sum_g softmax(h, g) * v[t, g, j]
        we = jnp.dot(wn.astype(jnp.bfloat16), ew,
                     preferred_element_type=jnp.float32)          # (TM, PV)
        att = jnp.dot((we * ve).astype(jnp.bfloat16), ar,
                      preferred_element_type=jnp.float32)         # (TM, H*dv)

        # Attention output projection + LayerNorm + residual.
        y = jnp.dot(att.astype(jnp.bfloat16), ww_ref[l],
                    preferred_element_type=jnp.float32) + bw_ref[l]
        y = _layernorm(y, g1_ref[l], be1_ref[l])
        y = x + y

        # Feed-forward + LayerNorm + residual (residual uses the BLOCK input x).
        h1 = jnp.maximum(
            jnp.dot(y.astype(jnp.bfloat16), w1_ref[l],
                    preferred_element_type=jnp.float32) + b1_ref[l], 0.0)
        f = jnp.dot(h1.astype(jnp.bfloat16), w2_ref[l],
                    preferred_element_type=jnp.float32) + b2_ref[l]
        f = _layernorm(f, g2_ref[l], be2_ref[l])
        return x + f

    act = jax.lax.fori_loop(0, n_layer, layer_body, x_ref[...],
                            unroll=n_layer <= 8)
    # Fused final LayerNorm; the (tm, D) output is stored exactly once.
    o_ref[...] = _layernorm(act, gf_ref[...], bf_ref[...])


# ---------------------------------------------------------------------------
# One-time parameter preparation (stacking, casting, scale folding, and the
# head-pair expansion folded into the fused QKV projection).
# ---------------------------------------------------------------------------

def fgpt_prepare_params(params, *, d_k, d_v, num_heads):
    H, dk, dv = num_heads, d_k, d_v
    P = H * H
    HK, HV = H * dk, H * dv
    PK, PV = P * dk, P * dv

    g_of_p = jnp.arange(P) // H          # key-head index of pair p = g*H + h
    h_of_p = jnp.arange(P) % H           # query-head index of pair p

    def onehot(mask):
        return mask.astype(jnp.float32)

    rk = jnp.arange(HK); rk_h, rk_d = rk // dk, rk % dk
    ck = jnp.arange(PK); ck_p, ck_d = ck // dk, ck % dk
    # EQ[h*dk+d, p*dk+d] = 1 iff h == h(p)   (query-head expansion)
    EQ = onehot((rk_h[:, None] == h_of_p[ck_p][None, :]) &
                (rk_d[:, None] == ck_d[None, :]))
    # EK[g*dk+d, p*dk+d] = 1 iff g == g(p)   (key-head expansion)
    EK = onehot((rk_h[:, None] == g_of_p[ck_p][None, :]) &
                (rk_d[:, None] == ck_d[None, :]))

    rv = jnp.arange(HV); rv_h, rv_d = rv // dv, rv % dv
    cv = jnp.arange(PV); cv_p, cv_d = cv // dv, cv % dv
    # EV[g*dv+j, p*dv+j] = 1 iff g == g(p)   (value-head expansion)
    EV = onehot((rv_h[:, None] == g_of_p[cv_p][None, :]) &
                (rv_d[:, None] == cv_d[None, :]))

    # In-kernel constants (exact one-hots stored in bf16).
    SR = onehot(ck_p[:, None] == jnp.arange(P)[None, :])                  # (PK, P)
    BH = onehot(jnp.arange(H)[:, None] == h_of_p[None, :])                # (H, P)
    EW = onehot(jnp.arange(P)[:, None] == cv_p[None, :])                  # (P, PV)
    AR = onehot((h_of_p[cv_p][:, None] == rv_h[None, :]) &
                (cv_d[:, None] == rv_d[None, :]))                         # (PV, HV)

    scale = 1.0 / (float(dk) ** 0.5)     # fold 1/sqrt(d_k) into Q projection

    def stack(name):
        return jnp.stack([lp[name] for lp in params["layers"]], axis=0)

    WQ, BQ = stack("wq") * scale, stack("bq") * scale
    WK, BK = stack("wk"), stack("bk")
    WV, BV = stack("wv"), stack("bv")

    # Fused projection: x @ WP + BP directly yields [qe | ke | ve].
    WP = jnp.concatenate([jnp.einsum("ldo,oe->lde", WQ, EQ),
                          jnp.einsum("ldo,oe->lde", WK, EK),
                          jnp.einsum("ldo,oe->lde", WV, EV)], axis=-1)
    BP = jnp.concatenate([jnp.einsum("lbo,oe->lbe", BQ, EQ),
                          jnp.einsum("lbo,oe->lbe", BK, EK),
                          jnp.einsum("lbo,oe->lbe", BV, EV)], axis=-1)

    return dict(
        wp=WP.astype(jnp.bfloat16), bp=BP.astype(jnp.float32),
        ww=stack("ww").astype(jnp.bfloat16), bw=stack("bw").astype(jnp.float32),
        g1=stack("g1").astype(jnp.float32), be1=stack("be1").astype(jnp.float32),
        w1=stack("w1").astype(jnp.bfloat16), b1=stack("b1").astype(jnp.float32),
        w2=stack("w2").astype(jnp.bfloat16), b2=stack("b2").astype(jnp.float32),
        g2=stack("g2").astype(jnp.float32), be2=stack("be2").astype(jnp.float32),
        gf=params["gf"].astype(jnp.float32), bf=params["bf"].astype(jnp.float32),
        sr=SR.astype(jnp.bfloat16), bh=BH.astype(jnp.bfloat16),
        ew=EW.astype(jnp.bfloat16), ar=AR.astype(jnp.bfloat16),
        dims=dict(d_k=dk, d_v=dv, num_heads=H,
                  d_model=int(params["gf"].shape[-1]),
                  n_layer=len(params["layers"])),
    )


# ---------------------------------------------------------------------------
# Wrapper
# ---------------------------------------------------------------------------

def _vmem_budget_bytes():
    """Generation-aware VMEM budget: ~75% of physical, leaving compiler headroom."""
    cap = None
    try:
        cap = int(pltpu.get_tpu_info().vmem_capacity_bytes)
    except Exception:
        cap = None
    if not cap:
        kind = str(getattr(jax.devices()[0], "device_kind", "")).lower()
        cap = (64 if "v7" in kind else 128) * 1024 * 1024
    return (cap * 3) // 4


def _pick_tm(n_tokens, d_model, vmem_budget_bytes):
    """Largest multiple-of-8 power-of-two token tile fitting the VMEM budget,
    preferring an even number of tiles so both v7x TensorCores get equal work."""
    row_cap = max(8, (vmem_budget_bytes // 8) // max(4 * d_model, 1))
    cands = [c for c in (8, 16, 32, 64, 128, 256, 512, 1024, 2048, 4096)
             if c <= min(row_cap, n_tokens) and n_tokens % c == 0]
    if not cands:
        return n_tokens
    even = [c for c in cands if (n_tokens // c) % 2 == 0]
    return max(even) if even else max(cands)


_WEIGHT_NAMES = ("wp", "bp", "ww", "bw", "g1", "be1",
                 "w1", "b1", "w2", "b2", "g2", "be2",
                 "gf", "bf", "sr", "bh", "ew", "ar")


def fgpt_forward(x, prep, *, tm=None):
    dims = prep["dims"]
    H, dk, dv, L = dims["num_heads"], dims["d_k"], dims["d_v"], dims["n_layer"]
    B, S, D = x.shape
    N = B * S

    vmem_budget = _vmem_budget_bytes()
    if tm is None:
        tm = _pick_tm(N, D, vmem_budget)
    assert N % tm == 0, "token count must be divisible by the token tile"

    weights = tuple(prep[n] for n in _WEIGHT_NAMES)

    # All layer weights are pinned in VMEM for the whole kernel; guard the fit.
    # TODO(synk): for d_model/d_diff where the stacked weights exceed the VMEM
    # budget (especially v7x's 64 MiB), fall back to streaming per-layer weight
    # blocks over an extra "arbitrary" layer grid axis and tile d_diff.
    pinned_bytes = sum(int(w.size) * w.dtype.itemsize for w in weights)
    tile_bytes = 4 * tm * D * 4          # in + out tiles, double-buffered, f32
    assert 2 * pinned_bytes + tile_bytes < vmem_budget, \
        "stacked weights do not fit in VMEM; streaming fallback not implemented"

    xf = x.reshape(N, D).astype(jnp.float32)

    tok_spec = pl.BlockSpec((tm, D), lambda i: (i, 0))

    def pinned_spec(a):
        return pl.BlockSpec(a.shape, lambda i, _nd=a.ndim: (0,) * _nd)

    kern = functools.partial(_fgpt_kernel, num_heads=H, d_k=dk, d_v=dv, n_layer=L)

    # TODO(synk): with d_model < 128 the (tm, D) output stores are masked
    # partial-lane stores; packing multiple tokens per 128-lane row would fix
    # this but requires segment-wise LayerNorm constants.
    out = pl.pallas_call(
        kern,
        out_shape=jax.ShapeDtypeStruct((N, D), jnp.float32),
        grid=(N // tm,),
        in_specs=[tok_spec] + [pinned_spec(w) for w in weights],
        out_specs=tok_spec,
        compiler_params=pltpu.CompilerParams(
            dimension_semantics=("parallel",),
            vmem_limit_bytes=int(vmem_budget)),
    )(xf, *weights)

    return out.reshape(B, S, D)


# ---------------------------------------------------------------------------
# Pure-JAX reference (mirrors the PyTorch forward exactly)
# ---------------------------------------------------------------------------

def fgpt_reference(x, params, *, d_k, d_v, num_heads):
    B, S, D = x.shape

    def ln(z, g, b, eps=1e-5):
        mu = z.mean(-1, keepdims=True)
        var = ((z - mu) ** 2).mean(-1, keepdims=True)
        return (z - mu) / jnp.sqrt(var + eps) * g + b

    xf = x.reshape(-1, D)
    for lp in params["layers"]:
        q = (xf @ lp["wq"] + lp["bq"]).reshape(-1, num_heads, d_k)
        k = (xf @ lp["wk"] + lp["bk"]).reshape(-1, num_heads, d_k)
        v = (xf @ lp["wv"] + lp["bv"]).reshape(-1, num_heads, d_v)
        aw = jnp.einsum("thd,tgd->thg", q, k) / jnp.sqrt(jnp.float32(d_k))
        aw = jax.nn.softmax(aw, axis=-1)
        y = jnp.einsum("thg,tgv->thv", aw, v).reshape(-1, num_heads * d_v)
        y = y @ lp["ww"] + lp["bw"]
        y = ln(y, lp["g1"], lp["be1"])
        y = xf + y
        h = jnp.maximum(y @ lp["w1"] + lp["b1"], 0.0)
        f = h @ lp["w2"] + lp["b2"]
        f = ln(f, lp["g2"], lp["be2"])
        xf = xf + f
    xf = ln(xf, params["gf"], params["bf"])
    return xf.reshape(B, S, D)


# ---------------------------------------------------------------------------
# Deterministic parameter construction
# ---------------------------------------------------------------------------

def make_params(key, *, d_k, d_v, d_model, num_heads, d_diff, n_layer):
    def lin(k, fan_in, fan_out):
        kw, kb = jax.random.split(k)
        w = jax.random.normal(kw, (fan_in, fan_out), jnp.float32) * 0.05
        b = jax.random.normal(kb, (1, fan_out), jnp.float32) * 0.05
        return w, b

    layers = []
    for _ in range(n_layer):
        key, *ks = jax.random.split(key, 7)
        wq, bq = lin(ks[0], d_model, num_heads * d_k)
        wk, bk = lin(ks[1], d_model, num_heads * d_k)
        wv, bv = lin(ks[2], d_model, num_heads * d_v)
        ww, bw = lin(ks[3], num_heads * d_v, d_model)
        w1, b1 = lin(ks[4], d_model, d_diff)
        w2, b2 = lin(ks[5], d_diff, d_model)
        layers.append(dict(
            wq=wq, bq=bq, wk=wk, bk=bk, wv=wv, bv=bv, ww=ww, bw=bw,
            g1=jnp.ones((1, d_model), jnp.float32),
            be1=jnp.zeros((1, d_model), jnp.float32),
            w1=w1, b1=b1, w2=w2, b2=b2,
            g2=jnp.ones((1, d_model), jnp.float32),
            be2=jnp.zeros((1, d_model), jnp.float32),
        ))
    return dict(layers=layers,
                gf=jnp.ones((1, d_model), jnp.float32),
                bf=jnp.zeros((1, d_model), jnp.float32))


# ---------------------------------------------------------------------------
# Main
# ---------------------------------------------------------------------------

if __name__ == "__main__":
    d_k, d_v, d_model, num_heads, d_diff, n_layer = 8, 8, 32, 4, 64, 2
    B, S = 2, 8

    key = jax.random.PRNGKey(0)
    kx, kp = jax.random.split(key)
    x = jax.random.normal(kx, (B, S, d_model), jnp.float32)
    params = make_params(kp, d_k=d_k, d_v=d_v, d_model=d_model,
                         num_heads=num_heads, d_diff=d_diff, n_layer=n_layer)

    prep = fgpt_prepare_params(params, d_k=d_k, d_v=d_v, num_heads=num_heads)

    out = fgpt_forward(x, prep)
    out = jax.block_until_ready(out)

    ref = fgpt_reference(x, params, d_k=d_k, d_v=d_v, num_heads=num_heads)
    assert out.shape == (B, S, d_model)
    assert bool(jnp.allclose(out, ref, atol=5e-2, rtol=5e-2)), "mismatch vs reference"

    print("KERNEL_OK")
</pallas_src>

<mosaic_0001>
module attributes {stable_mosaic.version = 11 : i64} {
  func.func @_fgpt_kernel(%arg0: i32, %arg1: memref<8x32xf32, #tpu.memory_space<vmem>>, %arg2: memref<2x32x384xbf16, #tpu.memory_space<vmem>>, %arg3: memref<2x1x384xf32, #tpu.memory_space<vmem>>, %arg4: memref<2x32x32xbf16, #tpu.memory_space<vmem>>, %arg5: memref<2x1x32xf32, #tpu.memory_space<vmem>>, %arg6: memref<2x1x32xf32, #tpu.memory_space<vmem>>, %arg7: memref<2x1x32xf32, #tpu.memory_space<vmem>>, %arg8: memref<2x32x64xbf16, #tpu.memory_space<vmem>>, %arg9: memref<2x1x64xf32, #tpu.memory_space<vmem>>, %arg10: memref<2x64x32xbf16, #tpu.memory_space<vmem>>, %arg11: memref<2x1x32xf32, #tpu.memory_space<vmem>>, %arg12: memref<2x1x32xf32, #tpu.memory_space<vmem>>, %arg13: memref<2x1x32xf32, #tpu.memory_space<vmem>>, %arg14: memref<1x32xf32, #tpu.memory_space<vmem>>, %arg15: memref<1x32xf32, #tpu.memory_space<vmem>>, %arg16: memref<128x16xbf16, #tpu.memory_space<vmem>>, %arg17: memref<4x16xbf16, #tpu.memory_space<vmem>>, %arg18: memref<16x128xbf16, #tpu.memory_space<vmem>>, %arg19: memref<128x32xbf16, #tpu.memory_space<vmem>>, %arg20: memref<8x32xf32, #tpu.memory_space<vmem>>) attributes {dimension_semantics = [#tpu.dimension_semantics<parallel>], iteration_bounds = array<i64: 2>, scalar_prefetch = 0 : i64, scratch_operands = 0 : i64, tpu.core_type = #tpu.core_type<tc>, window_params = [{transform_indices = @transform_0, window_bounds = array<i64: 8, 32>}, {pipeline_mode = #tpu.pipeline_mode<synchronous>, transform_indices = @transform_1, window_bounds = array<i64: 2, 32, 384>}, {pipeline_mode = #tpu.pipeline_mode<synchronous>, transform_indices = @transform_2, window_bounds = array<i64: 2, 1, 384>}, {pipeline_mode = #tpu.pipeline_mode<synchronous>, transform_indices = @transform_3, window_bounds = array<i64: 2, 32, 32>}, {pipeline_mode = #tpu.pipeline_mode<synchronous>, transform_indices = @transform_4, window_bounds = array<i64: 2, 1, 32>}, {pipeline_mode = #tpu.pipeline_mode<synchronous>, transform_indices = @transform_5, window_bounds = array<i64: 2, 1, 32>}, {pipeline_mode = #tpu.pipeline_mode<synchronous>, transform_indices = @transform_6, window_bounds = array<i64: 2, 1, 32>}, {pipeline_mode = #tpu.pipeline_mode<synchronous>, transform_indices = @transform_7, window_bounds = array<i64: 2, 32, 64>}, {pipeline_mode = #tpu.pipeline_mode<synchronous>, transform_indices = @transform_8, window_bounds = array<i64: 2, 1, 64>}, {pipeline_mode = #tpu.pipeline_mode<synchronous>, transform_indices = @transform_9, window_bounds = array<i64: 2, 64, 32>}, {pipeline_mode = #tpu.pipeline_mode<synchronous>, transform_indices = @transform_10, window_bounds = array<i64: 2, 1, 32>}, {pipeline_mode = #tpu.pipeline_mode<synchronous>, transform_indices = @transform_11, window_bounds = array<i64: 2, 1, 32>}, {pipeline_mode = #tpu.pipeline_mode<synchronous>, transform_indices = @transform_12, window_bounds = array<i64: 2, 1, 32>}, {pipeline_mode = #tpu.pipeline_mode<synchronous>, transform_indices = @transform_13, window_bounds = array<i64: 1, 32>}, {pipeline_mode = #tpu.pipeline_mode<synchronous>, transform_indices = @transform_14, window_bounds = array<i64: 1, 32>}, {pipeline_mode = #tpu.pipeline_mode<synchronous>, transform_indices = @transform_15, window_bounds = array<i64: 128, 16>}, {pipeline_mode = #tpu.pipeline_mode<synchronous>, transform_indices = @transform_16, window_bounds = array<i64: 4, 16>}, {pipeline_mode = #tpu.pipeline_mode<synchronous>, transform_indices = @transform_17, window_bounds = array<i64: 16, 128>}, {pipeline_mode = #tpu.pipeline_mode<synchronous>, transform_indices = @transform_18, window_bounds = array<i64: 128, 32>}, {transform_indices = @transform_19, window_bounds = array<i64: 8, 32>}]} {
    %c0 = arith.constant 0 : index
    %c0_0 = arith.constant 0 : index
    %0 = vector.load %arg16[%c0, %c0_0] : memref<128x16xbf16, #tpu.memory_space<vmem>>, vector<128x16xbf16>
    %c0_1 = arith.constant 0 : index
    %c0_2 = arith.constant 0 : index
    %1 = vector.load %arg17[%c0_1, %c0_2] : memref<4x16xbf16, #tpu.memory_space<vmem>>, vector<4x16xbf16>
    %c0_3 = arith.constant 0 : index
    %c0_4 = arith.constant 0 : index
    %2 = vector.load %arg18[%c0_3, %c0_4] : memref<16x128xbf16, #tpu.memory_space<vmem>>, vector<16x128xbf16>
    %c0_5 = arith.constant 0 : index
    %c0_6 = arith.constant 0 : index
    %3 = vector.load %arg19[%c0_5, %c0_6] : memref<128x32xbf16, #tpu.memory_space<vmem>>, vector<128x32xbf16>
    %c0_7 = arith.constant 0 : index
    %c0_8 = arith.constant 0 : index
    %4 = vector.load %arg1[%c0_7, %c0_8] : memref<8x32xf32, #tpu.memory_space<vmem>>, vector<8x32xf32>
    %c0_i32 = arith.constant 0 : i32
    %5 = arith.truncf %4 : vector<8x32xf32> to vector<8x32xbf16>
    %6 = arith.index_cast %c0_i32 : i32 to index
    %c0_9 = arith.constant 0 : index
    %c0_10 = arith.constant 0 : index
    %7 = vector.load %arg2[%6, %c0_9, %c0_10] : memref<2x32x384xbf16, #tpu.memory_space<vmem>>, vector<1x32x384xbf16>
    %8 = vector.shape_cast %7 : vector<1x32x384xbf16> to vector<32x384xbf16>
    %cst = arith.constant dense<0.000000e+00> : vector<8x384xf32>
    %9 = tpu.matmul %5, %8, %cst {dimension_numbers = #tpu.dot_dimension_numbers<[1], [0], [0], [1], [0, 0, 1, 1], [], []>} : vector<8x32xbf16>, vector<32x384xbf16>, vector<8x384xf32> -> vector<8x384xf32>
    %10 = arith.index_cast %c0_i32 : i32 to index
    %c0_11 = arith.constant 0 : index
    %c0_12 = arith.constant 0 : index
    %11 = vector.load %arg3[%10, %c0_11, %c0_12] : memref<2x1x384xf32, #tpu.memory_space<vmem>>, vector<1x1x384xf32>
    %12 = vector.shape_cast %11 : vector<1x1x384xf32> to vector<1x384xf32>
    %13 = vector.broadcast %12 : vector<1x384xf32> to vector<8x384xf32>
    %14 = arith.addf %9, %13 : vector<8x384xf32>
    %15 = vector.extract_strided_slice %14 {offsets = [0, 0], sizes = [8, 128], strides = [1, 1]} : vector<8x384xf32> to vector<8x128xf32>
    %16 = vector.extract_strided_slice %14 {offsets = [0, 128], sizes = [8, 128], strides = [1, 1]} : vector<8x384xf32> to vector<8x128xf32>
    %17 = vector.extract_strided_slice %14 {offsets = [0, 256], sizes = [8, 128], strides = [1, 1]} : vector<8x384xf32> to vector<8x128xf32>
    %18 = arith.mulf %15, %16 : vector<8x128xf32>
    %19 = arith.truncf %18 : vector<8x128xf32> to vector<8x128xbf16>
    %cst_13 = arith.constant dense<0.000000e+00> : vector<8x16xf32>
    %20 = tpu.matmul %19, %0, %cst_13 {dimension_numbers = #tpu.dot_dimension_numbers<[1], [0], [0], [1], [0, 0, 1, 1], [], []>} : vector<8x128xbf16>, vector<128x16xbf16>, vector<8x16xf32> -> vector<8x16xf32>
    %21 = vector.extract_strided_slice %20 {offsets = [0, 0], sizes = [8, 4], strides = [1, 1]} : vector<8x16xf32> to vector<8x4xf32>
    %22 = vector.extract_strided_slice %20 {offsets = [0, 4], sizes = [8, 4], strides = [1, 1]} : vector<8x16xf32> to vector<8x4xf32>
    %23 = arith.maximumf %21, %22 : vector<8x4xf32>
    %24 = vector.extract_strided_slice %20 {offsets = [0, 8], sizes = [8, 4], strides = [1, 1]} : vector<8x16xf32> to vector<8x4xf32>
    %25 = arith.maximumf %23, %24 : vector<8x4xf32>
    %26 = vector.extract_strided_slice %20 {offsets = [0, 12], sizes = [8, 4], strides = [1, 1]} : vector<8x16xf32> to vector<8x4xf32>
    %27 = arith.maximumf %25, %26 : vector<8x4xf32>
    %28 = arith.truncf %27 : vector<8x4xf32> to vector<8x4xbf16>
    %cst_14 = arith.constant dense<0.000000e+00> : vector<8x16xf32>
    %29 = tpu.matmul %28, %1, %cst_14 {dimension_numbers = #tpu.dot_dimension_numbers<[1], [0], [0], [1], [0, 0, 1, 1], [], []>} : vector<8x4xbf16>, vector<4x16xbf16>, vector<8x16xf32> -> vector<8x16xf32>
    %30 = arith.subf %20, %29 : vector<8x16xf32>
    %31 = math.exp %30 : vector<8x16xf32>
    %32 = vector.extract_strided_slice %31 {offsets = [0, 0], sizes = [8, 4], strides = [1, 1]} : vector<8x16xf32> to vector<8x4xf32>
    %33 = vector.extract_strided_slice %31 {offsets = [0, 4], sizes = [8, 4], strides = [1, 1]} : vector<8x16xf32> to vector<8x4xf32>
    %34 = arith.addf %32, %33 : vector<8x4xf32>
    %35 = vector.extract_strided_slice %31 {offsets = [0, 8], sizes = [8, 4], strides = [1, 1]} : vector<8x16xf32> to vector<8x4xf32>
    %36 = arith.addf %34, %35 : vector<8x4xf32>
    %37 = vector.extract_strided_slice %31 {offsets = [0, 12], sizes = [8, 4], strides = [1, 1]} : vector<8x16xf32> to vector<8x4xf32>
    %38 = arith.addf %36, %37 : vector<8x4xf32>
    %39 = tpu.reciprocal %38 {approx = true} : vector<8x4xf32> -> vector<8x4xf32>
    %40 = arith.truncf %39 : vector<8x4xf32> to vector<8x4xbf16>
    %cst_15 = arith.constant dense<0.000000e+00> : vector<8x16xf32>
    %41 = tpu.matmul %40, %1, %cst_15 {dimension_numbers = #tpu.dot_dimension_numbers<[1], [0], [0], [1], [0, 0, 1, 1], [], []>} : vector<8x4xbf16>, vector<4x16xbf16>, vector<8x16xf32> -> vector<8x16xf32>
    %42 = arith.mulf %31, %41 : vector<8x16xf32>
    %43 = arith.truncf %42 : vector<8x16xf32> to vector<8x16xbf16>
    %cst_16 = arith.constant dense<0.000000e+00> : vector<8x128xf32>
    %44 = tpu.matmul %43, %2, %cst_16 {dimension_numbers = #tpu.dot_dimension_numbers<[1], [0], [0], [1], [0, 0, 1, 1], [], []>} : vector<8x16xbf16>, vector<16x128xbf16>, vector<8x128xf32> -> vector<8x128xf32>
    %45 = arith.mulf %44, %17 : vector<8x128xf32>
    %46 = arith.truncf %45 : vector<8x128xf32> to vector<8x128xbf16>
    %cst_17 = arith.constant dense<0.000000e+00> : vector<8x32xf32>
    %47 = tpu.matmul %46, %3, %cst_17 {dimension_numbers = #tpu.dot_dimension_numbers<[1], [0], [0], [1], [0, 0, 1, 1], [], []>} : vector<8x128xbf16>, vector<128x32xbf16>, vector<8x32xf32> -> vector<8x32xf32>
    %48 = arith.truncf %47 : vector<8x32xf32> to vector<8x32xbf16>
    %49 = arith.index_cast %c0_i32 : i32 to index
    %c0_18 = arith.constant 0 : index
    %c0_19 = arith.constant 0 : index
    %50 = vector.load %arg4[%49, %c0_18, %c0_19] : memref<2x32x32xbf16, #tpu.memory_space<vmem>>, vector<1x32x32xbf16>
    %51 = vector.shape_cast %50 : vector<1x32x32xbf16> to vector<32x32xbf16>
    %cst_20 = arith.constant dense<0.000000e+00> : vector<8x32xf32>
    %52 = tpu.matmul %48, %51, %cst_20 {dimension_numbers = #tpu.dot_dimension_numbers<[1], [0], [0], [1], [0, 0, 1, 1], [], []>} : vector<8x32xbf16>, vector<32x32xbf16>, vector<8x32xf32> -> vector<8x32xf32>
    %53 = arith.index_cast %c0_i32 : i32 to index
    %c0_21 = arith.constant 0 : index
    %c0_22 = arith.constant 0 : index
    %54 = vector.load %arg5[%53, %c0_21, %c0_22] : memref<2x1x32xf32, #tpu.memory_space<vmem>>, vector<1x1x32xf32>
    %55 = vector.shape_cast %54 : vector<1x1x32xf32> to vector<1x32xf32>
    %56 = vector.broadcast %55 : vector<1x32xf32> to vector<8x32xf32>
    %57 = arith.addf %52, %56 : vector<8x32xf32>
    %58 = arith.index_cast %c0_i32 : i32 to index
    %c0_23 = arith.constant 0 : index
    %c0_24 = arith.constant 0 : index
    %59 = vector.load %arg6[%58, %c0_23, %c0_24] : memref<2x1x32xf32, #tpu.memory_space<vmem>>, vector<1x1x32xf32>
    %60 = vector.shape_cast %59 : vector<1x1x32xf32> to vector<1x32xf32>
    %61 = arith.index_cast %c0_i32 : i32 to index
    %c0_25 = arith.constant 0 : index
    %c0_26 = arith.constant 0 : index
    %62 = vector.load %arg7[%61, %c0_25, %c0_26] : memref<2x1x32xf32, #tpu.memory_space<vmem>>, vector<1x1x32xf32>
    %63 = vector.shape_cast %62 : vector<1x1x32xf32> to vector<1x32xf32>
    %cst_27 = arith.constant dense<0.000000e+00> : vector<8xf32>
    %64 = vector.multi_reduction <add>, %57, %cst_27 [1] : vector<8x32xf32> to vector<8xf32>
    %65 = vector.shape_cast %64 : vector<8xf32> to vector<8x1xf32>
    %cst_28 = arith.constant 3.200000e+01 : f32
    %66 = vector.broadcast %cst_28 : f32 to vector<8x1xf32>
    %67 = arith.divf %65, %66 : vector<8x1xf32>
    %68 = vector.broadcast %67 : vector<8x1xf32> to vector<8x32xf32>
    %69 = arith.subf %57, %68 : vector<8x32xf32>
    %70 = arith.mulf %69, %69 : vector<8x32xf32>
    %cst_29 = arith.constant dense<0.000000e+00> : vector<8xf32>
    %71 = vector.multi_reduction <add>, %70, %cst_29 [1] : vector<8x32xf32> to vector<8xf32>
    %72 = vector.shape_cast %71 : vector<8xf32> to vector<8x1xf32>
    %cst_30 = arith.constant 3.200000e+01 : f32
    %73 = vector.broadcast %cst_30 : f32 to vector<8x1xf32>
    %74 = arith.divf %72, %73 : vector<8x1xf32>
    %75 = vector.broadcast %67 : vector<8x1xf32> to vector<8x32xf32>
    %76 = arith.subf %57, %75 : vector<8x32xf32>
    %cst_31 = arith.constant 9.99999974E-6 : f32
    %77 = vector.broadcast %cst_31 : f32 to vector<8x1xf32>
    %78 = arith.addf %74, %77 : vector<8x1xf32>
    %79 = math.rsqrt %78 : vector<8x1xf32>
    %80 = vector.broadcast %79 : vector<8x1xf32> to vector<8x32xf32>
    %81 = arith.mulf %76, %80 : vector<8x32xf32>
    %82 = vector.broadcast %60 : vector<1x32xf32> to vector<8x32xf32>
    %83 = arith.mulf %81, %82 : vector<8x32xf32>
    %84 = vector.broadcast %63 : vector<1x32xf32> to vector<8x32xf32>
    %85 = arith.addf %83, %84 : vector<8x32xf32>
    %86 = arith.addf %4, %85 : vector<8x32xf32>
    %87 = arith.truncf %86 : vector<8x32xf32> to vector<8x32xbf16>
    %88 = arith.index_cast %c0_i32 : i32 to index
    %c0_32 = arith.constant 0 : index
    %c0_33 = arith.constant 0 : index
    %89 = vector.load %arg8[%88, %c0_32, %c0_33] : memref<2x32x64xbf16, #tpu.memory_space<vmem>>, vector<1x32x64xbf16>
    %90 = vector.shape_cast %89 : vector<1x32x64xbf16> to vector<32x64xbf16>
    %cst_34 = arith.constant dense<0.000000e+00> : vector<8x64xf32>
    %91 = tpu.matmul %87, %90, %cst_34 {dimension_numbers = #tpu.dot_dimension_numbers<[1], [0], [0], [1], [0, 0, 1, 1], [], []>} : vector<8x32xbf16>, vector<32x64xbf16>, vector<8x64xf32> -> vector<8x64xf32>
    %92 = arith.index_cast %c0_i32 : i32 to index
    %c0_35 = arith.constant 0 : index
    %c0_36 = arith.constant 0 : index
    %93 = vector.load %arg9[%92, %c0_35, %c0_36] : memref<2x1x64xf32, #tpu.memory_space<vmem>>, vector<1x1x64xf32>
    %94 = vector.shape_cast %93 : vector<1x1x64xf32> to vector<1x64xf32>
    %95 = vector.broadcast %94 : vector<1x64xf32> to vector<8x64xf32>
    %96 = arith.addf %91, %95 : vector<8x64xf32>
    %cst_37 = arith.constant 0.000000e+00 : f32
    %97 = vector.broadcast %cst_37 : f32 to vector<8x64xf32>
    %98 = arith.maximumf %96, %97 : vector<8x64xf32>
    %99 = arith.truncf %98 : vector<8x64xf32> to vector<8x64xbf16>
    %100 = arith.index_cast %c0_i32 : i32 to index
    %c0_38 = arith.constant 0 : index
    %c0_39 = arith.constant 0 : index
    %101 = vector.load %arg10[%100, %c0_38, %c0_39] : memref<2x64x32xbf16, #tpu.memory_space<vmem>>, vector<1x64x32xbf16>
    %102 = vector.shape_cast %101 : vector<1x64x32xbf16> to vector<64x32xbf16>
    %cst_40 = arith.constant dense<0.000000e+00> : vector<8x32xf32>
    %103 = tpu.matmul %99, %102, %cst_40 {dimension_numbers = #tpu.dot_dimension_numbers<[1], [0], [0], [1], [0, 0, 1, 1], [], []>} : vector<8x64xbf16>, vector<64x32xbf16>, vector<8x32xf32> -> vector<8x32xf32>
    %104 = arith.index_cast %c0_i32 : i32 to index
    %c0_41 = arith.constant 0 : index
    %c0_42 = arith.constant 0 : index
    %105 = vector.load %arg11[%104, %c0_41, %c0_42] : memref<2x1x32xf32, #tpu.memory_space<vmem>>, vector<1x1x32xf32>
    %106 = vector.shape_cast %105 : vector<1x1x32xf32> to vector<1x32xf32>
    %107 = vector.broadcast %106 : vector<1x32xf32> to vector<8x32xf32>
    %108 = arith.addf %103, %107 : vector<8x32xf32>
    %109 = arith.index_cast %c0_i32 : i32 to index
    %c0_43 = arith.constant 0 : index
    %c0_44 = arith.constant 0 : index
    %110 = vector.load %arg12[%109, %c0_43, %c0_44] : memref<2x1x32xf32, #tpu.memory_space<vmem>>, vector<1x1x32xf32>
    %111 = vector.shape_cast %110 : vector<1x1x32xf32> to vector<1x32xf32>
    %112 = arith.index_cast %c0_i32 : i32 to index
    %c0_45 = arith.constant 0 : index
    %c0_46 = arith.constant 0 : index
    %113 = vector.load %arg13[%112, %c0_45, %c0_46] : memref<2x1x32xf32, #tpu.memory_space<vmem>>, vector<1x1x32xf32>
    %114 = vector.shape_cast %113 : vector<1x1x32xf32> to vector<1x32xf32>
    %cst_47 = arith.constant dense<0.000000e+00> : vector<8xf32>
    %115 = vector.multi_reduction <add>, %108, %cst_47 [1] : vector<8x32xf32> to vector<8xf32>
    %116 = vector.shape_cast %115 : vector<8xf32> to vector<8x1xf32>
    %cst_48 = arith.constant 3.200000e+01 : f32
    %117 = vector.broadcast %cst_48 : f32 to vector<8x1xf32>
    %118 = arith.divf %116, %117 : vector<8x1xf32>
    %119 = vector.broadcast %118 : vector<8x1xf32> to vector<8x32xf32>
    %120 = arith.subf %108, %119 : vector<8x32xf32>
    %121 = arith.mulf %120, %120 : vector<8x32xf32>
    %cst_49 = arith.constant dense<0.000000e+00> : vector<8xf32>
    %122 = vector.multi_reduction <add>, %121, %cst_49 [1] : vector<8x32xf32> to vector<8xf32>
    %123 = vector.shape_cast %122 : vector<8xf32> to vector<8x1xf32>
    %cst_50 = arith.constant 3.200000e+01 : f32
    %124 = vector.broadcast %cst_50 : f32 to vector<8x1xf32>
    %125 = arith.divf %123, %124 : vector<8x1xf32>
    %126 = vector.broadcast %118 : vector<8x1xf32> to vector<8x32xf32>
    %127 = arith.subf %108, %126 : vector<8x32xf32>
    %cst_51 = arith.constant 9.99999974E-6 : f32
    %128 = vector.broadcast %cst_51 : f32 to vector<8x1xf32>
    %129 = arith.addf %125, %128 : vector<8x1xf32>
    %130 = math.rsqrt %129 : vector<8x1xf32>
    %131 = vector.broadcast %130 : vector<8x1xf32> to vector<8x32xf32>
    %132 = arith.mulf %127, %131 : vector<8x32xf32>
    %133 = vector.broadcast %111 : vector<1x32xf32> to vector<8x32xf32>
    %134 = arith.mulf %132, %133 : vector<8x32xf32>
    %135 = vector.broadcast %114 : vector<1x32xf32> to vector<8x32xf32>
    %136 = arith.addf %134, %135 : vector<8x32xf32>
    %137 = arith.addf %4, %136 : vector<8x32xf32>
    %c1_i32 = arith.constant 1 : i32
    %138 = arith.truncf %137 : vector<8x32xf32> to vector<8x32xbf16>
    %139 = arith.index_cast %c1_i32 : i32 to index
    %c0_52 = arith.constant 0 : index
    %c0_53 = arith.constant 0 : index
    %140 = vector.load %arg2[%139, %c0_52, %c0_53] : memref<2x32x384xbf16, #tpu.memory_space<vmem>>, vector<1x32x384xbf16>
    %141 = vector.shape_cast %140 : vector<1x32x384xbf16> to vector<32x384xbf16>
    %cst_54 = arith.constant dense<0.000000e+00> : vector<8x384xf32>
    %142 = tpu.matmul %138, %141, %cst_54 {dimension_numbers = #tpu.dot_dimension_numbers<[1], [0], [0], [1], [0, 0, 1, 1], [], []>} : vector<8x32xbf16>, vector<32x384xbf16>, vector<8x384xf32> -> vector<8x384xf32>
    %143 = arith.index_cast %c1_i32 : i32 to index
    %c0_55 = arith.constant 0 : index
    %c0_56 = arith.constant 0 : index
    %144 = vector.load %arg3[%143, %c0_55, %c0_56] : memref<2x1x384xf32, #tpu.memory_space<vmem>>, vector<1x1x384xf32>
    %145 = vector.shape_cast %144 : vector<1x1x384xf32> to vector<1x384xf32>
    %146 = vector.broadcast %145 : vector<1x384xf32> to vector<8x384xf32>
    %147 = arith.addf %142, %146 : vector<8x384xf32>
    %148 = vector.extract_strided_slice %147 {offsets = [0, 0], sizes = [8, 128], strides = [1, 1]} : vector<8x384xf32> to vector<8x128xf32>
    %149 = vector.extract_strided_slice %147 {offsets = [0, 128], sizes = [8, 128], strides = [1, 1]} : vector<8x384xf32> to vector<8x128xf32>
    %150 = vector.extract_strided_slice %147 {offsets = [0, 256], sizes = [8, 128], strides = [1, 1]} : vector<8x384xf32> to vector<8x128xf32>
    %151 = arith.mulf %148, %149 : vector<8x128xf32>
    %152 = arith.truncf %151 : vector<8x128xf32> to vector<8x128xbf16>
    %cst_57 = arith.constant dense<0.000000e+00> : vector<8x16xf32>
    %153 = tpu.matmul %152, %0, %cst_57 {dimension_numbers = #tpu.dot_dimension_numbers<[1], [0], [0], [1], [0, 0, 1, 1], [], []>} : vector<8x128xbf16>, vector<128x16xbf16>, vector<8x16xf32> -> vector<8x16xf32>
    %154 = vector.extract_strided_slice %153 {offsets = [0, 0], sizes = [8, 4], strides = [1, 1]} : vector<8x16xf32> to vector<8x4xf32>
    %155 = vector.extract_strided_slice %153 {offsets = [0, 4], sizes = [8, 4], strides = [1, 1]} : vector<8x16xf32> to vector<8x4xf32>
    %156 = arith.maximumf %154, %155 : vector<8x4xf32>
    %157 = vector.extract_strided_slice %153 {offsets = [0, 8], sizes = [8, 4], strides = [1, 1]} : vector<8x16xf32> to vector<8x4xf32>
    %158 = arith.maximumf %156, %157 : vector<8x4xf32>
    %159 = vector.extract_strided_slice %153 {offsets = [0, 12], sizes = [8, 4], strides = [1, 1]} : vector<8x16xf32> to vector<8x4xf32>
    %160 = arith.maximumf %158, %159 : vector<8x4xf32>
    %161 = arith.truncf %160 : vector<8x4xf32> to vector<8x4xbf16>
    %cst_58 = arith.constant dense<0.000000e+00> : vector<8x16xf32>
    %162 = tpu.matmul %161, %1, %cst_58 {dimension_numbers = #tpu.dot_dimension_numbers<[1], [0], [0], [1], [0, 0, 1, 1], [], []>} : vector<8x4xbf16>, vector<4x16xbf16>, vector<8x16xf32> -> vector<8x16xf32>
    %163 = arith.subf %153, %162 : vector<8x16xf32>
    %164 = math.exp %163 : vector<8x16xf32>
    %165 = vector.extract_strided_slice %164 {offsets = [0, 0], sizes = [8, 4], strides = [1, 1]} : vector<8x16xf32> to vector<8x4xf32>
    %166 = vector.extract_strided_slice %164 {offsets = [0, 4], sizes = [8, 4], strides = [1, 1]} : vector<8x16xf32> to vector<8x4xf32>
    %167 = arith.addf %165, %166 : vector<8x4xf32>
    %168 = vector.extract_strided_slice %164 {offsets = [0, 8], sizes = [8, 4], strides = [1, 1]} : vector<8x16xf32> to vector<8x4xf32>
    %169 = arith.addf %167, %168 : vector<8x4xf32>
    %170 = vector.extract_strided_slice %164 {offsets = [0, 12], sizes = [8, 4], strides = [1, 1]} : vector<8x16xf32> to vector<8x4xf32>
    %171 = arith.addf %169, %170 : vector<8x4xf32>
    %172 = tpu.reciprocal %171 {approx = true} : vector<8x4xf32> -> vector<8x4xf32>
    %173 = arith.truncf %172 : vector<8x4xf32> to vector<8x4xbf16>
    %cst_59 = arith.constant dense<0.000000e+00> : vector<8x16xf32>
    %174 = tpu.matmul %173, %1, %cst_59 {dimension_numbers = #tpu.dot_dimension_numbers<[1], [0], [0], [1], [0, 0, 1, 1], [], []>} : vector<8x4xbf16>, vector<4x16xbf16>, vector<8x16xf32> -> vector<8x16xf32>
    %175 = arith.mulf %164, %174 : vector<8x16xf32>
    %176 = arith.truncf %175 : vector<8x16xf32> to vector<8x16xbf16>
    %cst_60 = arith.constant dense<0.000000e+00> : vector<8x128xf32>
    %177 = tpu.matmul %176, %2, %cst_60 {dimension_numbers = #tpu.dot_dimension_numbers<[1], [0], [0], [1], [0, 0, 1, 1], [], []>} : vector<8x16xbf16>, vector<16x128xbf16>, vector<8x128xf32> -> vector<8x128xf32>
    %178 = arith.mulf %177, %150 : vector<8x128xf32>
    %179 = arith.truncf %178 : vector<8x128xf32> to vector<8x128xbf16>
    %cst_61 = arith.constant dense<0.000000e+00> : vector<8x32xf32>
    %180 = tpu.matmul %179, %3, %cst_61 {dimension_numbers = #tpu.dot_dimension_numbers<[1], [0], [0], [1], [0, 0, 1, 1], [], []>} : vector<8x128xbf16>, vector<128x32xbf16>, vector<8x32xf32> -> vector<8x32xf32>
    %181 = arith.truncf %180 : vector<8x32xf32> to vector<8x32xbf16>
    %182 = arith.index_cast %c1_i32 : i32 to index
    %c0_62 = arith.constant 0 : index
    %c0_63 = arith.constant 0 : index
    %183 = vector.load %arg4[%182, %c0_62, %c0_63] : memref<2x32x32xbf16, #tpu.memory_space<vmem>>, vector<1x32x32xbf16>
    %184 = vector.shape_cast %183 : vector<1x32x32xbf16> to vector<32x32xbf16>
    %cst_64 = arith.constant dense<0.000000e+00> : vector<8x32xf32>
    %185 = tpu.matmul %181, %184, %cst_64 {dimension_numbers = #tpu.dot_dimension_numbers<[1], [0], [0], [1], [0, 0, 1, 1], [], []>} : vector<8x32xbf16>, vector<32x32xbf16>, vector<8x32xf32> -> vector<8x32xf32>
    %186 = arith.index_cast %c1_i32 : i32 to index
    %c0_65 = arith.constant 0 : index
    %c0_66 = arith.constant 0 : index
    %187 = vector.load %arg5[%186, %c0_65, %c0_66] : memref<2x1x32xf32, #tpu.memory_space<vmem>>, vector<1x1x32xf32>
    %188 = vector.shape_cast %187 : vector<1x1x32xf32> to vector<1x32xf32>
    %189 = vector.broadcast %188 : vector<1x32xf32> to vector<8x32xf32>
    %190 = arith.addf %185, %189 : vector<8x32xf32>
    %191 = arith.index_cast %c1_i32 : i32 to index
    %c0_67 = arith.constant 0 : index
    %c0_68 = arith.constant 0 : index
    %192 = vector.load %arg6[%191, %c0_67, %c0_68] : memref<2x1x32xf32, #tpu.memory_space<vmem>>, vector<1x1x32xf32>
    %193 = vector.shape_cast %192 : vector<1x1x32xf32> to vector<1x32xf32>
    %194 = arith.index_cast %c1_i32 : i32 to index
    %c0_69 = arith.constant 0 : index
    %c0_70 = arith.constant 0 : index
    %195 = vector.load %arg7[%194, %c0_69, %c0_70] : memref<2x1x32xf32, #tpu.memory_space<vmem>>, vector<1x1x32xf32>
    %196 = vector.shape_cast %195 : vector<1x1x32xf32> to vector<1x32xf32>
    %cst_71 = arith.constant dense<0.000000e+00> : vector<8xf32>
    %197 = vector.multi_reduction <add>, %190, %cst_71 [1] : vector<8x32xf32> to vector<8xf32>
    %198 = vector.shape_cast %197 : vector<8xf32> to vector<8x1xf32>
    %cst_72 = arith.constant 3.200000e+01 : f32
    %199 = vector.broadcast %cst_72 : f32 to vector<8x1xf32>
    %200 = arith.divf %198, %199 : vector<8x1xf32>
    %201 = vector.broadcast %200 : vector<8x1xf32> to vector<8x32xf32>
    %202 = arith.subf %190, %201 : vector<8x32xf32>
    %203 = arith.mulf %202, %202 : vector<8x32xf32>
    %cst_73 = arith.constant dense<0.000000e+00> : vector<8xf32>
    %204 = vector.multi_reduction <add>, %203, %cst_73 [1] : vector<8x32xf32> to vector<8xf32>
    %205 = vector.shape_cast %204 : vector<8xf32> to vector<8x1xf32>
    %cst_74 = arith.constant 3.200000e+01 : f32
    %206 = vector.broadcast %cst_74 : f32 to vector<8x1xf32>
    %207 = arith.divf %205, %206 : vector<8x1xf32>
    %208 = vector.broadcast %200 : vector<8x1xf32> to vector<8x32xf32>
    %209 = arith.subf %190, %208 : vector<8x32xf32>
    %cst_75 = arith.constant 9.99999974E-6 : f32
    %210 = vector.broadcast %cst_75 : f32 to vector<8x1xf32>
    %211 = arith.addf %207, %210 : vector<8x1xf32>
    %212 = math.rsqrt %211 : vector<8x1xf32>
    %213 = vector.broadcast %212 : vector<8x1xf32> to vector<8x32xf32>
    %214 = arith.mulf %209, %213 : vector<8x32xf32>
    %215 = vector.broadcast %193 : vector<1x32xf32> to vector<8x32xf32>
    %216 = arith.mulf %214, %215 : vector<8x32xf32>
    %217 = vector.broadcast %196 : vector<1x32xf32> to vector<8x32xf32>
    %218 = arith.addf %216, %217 : vector<8x32xf32>
    %219 = arith.addf %137, %218 : vector<8x32xf32>
    %220 = arith.truncf %219 : vector<8x32xf32> to vector<8x32xbf16>
    %221 = arith.index_cast %c1_i32 : i32 to index
    %c0_76 = arith.constant 0 : index
    %c0_77 = arith.constant 0 : index
    %222 = vector.load %arg8[%221, %c0_76, %c0_77] : memref<2x32x64xbf16, #tpu.memory_space<vmem>>, vector<1x32x64xbf16>
    %223 = vector.shape_cast %222 : vector<1x32x64xbf16> to vector<32x64xbf16>
    %cst_78 = arith.constant dense<0.000000e+00> : vector<8x64xf32>
    %224 = tpu.matmul %220, %223, %cst_78 {dimension_numbers = #tpu.dot_dimension_numbers<[1], [0], [0], [1], [0, 0, 1, 1], [], []>} : vector<8x32xbf16>, vector<32x64xbf16>, vector<8x64xf32> -> vector<8x64xf32>
    %225 = arith.index_cast %c1_i32 : i32 to index
    %c0_79 = arith.constant 0 : index
    %c0_80 = arith.constant 0 : index
    %226 = vector.load %arg9[%225, %c0_79, %c0_80] : memref<2x1x64xf32, #tpu.memory_space<vmem>>, vector<1x1x64xf32>
    %227 = vector.shape_cast %226 : vector<1x1x64xf32> to vector<1x64xf32>
    %228 = vector.broadcast %227 : vector<1x64xf32> to vector<8x64xf32>
    %229 = arith.addf %224, %228 : vector<8x64xf32>
    %cst_81 = arith.constant 0.000000e+00 : f32
    %230 = vector.broadcast %cst_81 : f32 to vector<8x64xf32>
    %231 = arith.maximumf %229, %230 : vector<8x64xf32>
    %232 = arith.truncf %231 : vector<8x64xf32> to vector<8x64xbf16>
    %233 = arith.index_cast %c1_i32 : i32 to index
    %c0_82 = arith.constant 0 : index
    %c0_83 = arith.constant 0 : index
    %234 = vector.load %arg10[%233, %c0_82, %c0_83] : memref<2x64x32xbf16, #tpu.memory_space<vmem>>, vector<1x64x32xbf16>
    %235 = vector.shape_cast %234 : vector<1x64x32xbf16> to vector<64x32xbf16>
    %cst_84 = arith.constant dense<0.000000e+00> : vector<8x32xf32>
    %236 = tpu.matmul %232, %235, %cst_84 {dimension_numbers = #tpu.dot_dimension_numbers<[1], [0], [0], [1], [0, 0, 1, 1], [], []>} : vector<8x64xbf16>, vector<64x32xbf16>, vector<8x32xf32> -> vector<8x32xf32>
    %237 = arith.index_cast %c1_i32 : i32 to index
    %c0_85 = arith.constant 0 : index
    %c0_86 = arith.constant 0 : index
    %238 = vector.load %arg11[%237, %c0_85, %c0_86] : memref<2x1x32xf32, #tpu.memory_space<vmem>>, vector<1x1x32xf32>
    %239 = vector.shape_cast %238 : vector<1x1x32xf32> to vector<1x32xf32>
    %240 = vector.broadcast %239 : vector<1x32xf32> to vector<8x32xf32>
    %241 = arith.addf %236, %240 : vector<8x32xf32>
    %242 = arith.index_cast %c1_i32 : i32 to index
    %c0_87 = arith.constant 0 : index
    %c0_88 = arith.constant 0 : index
    %243 = vector.load %arg12[%242, %c0_87, %c0_88] : memref<2x1x32xf32, #tpu.memory_space<vmem>>, vector<1x1x32xf32>
    %244 = vector.shape_cast %243 : vector<1x1x32xf32> to vector<1x32xf32>
    %245 = arith.index_cast %c1_i32 : i32 to index
    %c0_89 = arith.constant 0 : index
    %c0_90 = arith.constant 0 : index
    %246 = vector.load %arg13[%245, %c0_89, %c0_90] : memref<2x1x32xf32, #tpu.memory_space<vmem>>, vector<1x1x32xf32>
    %247 = vector.shape_cast %246 : vector<1x1x32xf32> to vector<1x32xf32>
    %cst_91 = arith.constant dense<0.000000e+00> : vector<8xf32>
    %248 = vector.multi_reduction <add>, %241, %cst_91 [1] : vector<8x32xf32> to vector<8xf32>
    %249 = vector.shape_cast %248 : vector<8xf32> to vector<8x1xf32>
    %cst_92 = arith.constant 3.200000e+01 : f32
    %250 = vector.broadcast %cst_92 : f32 to vector<8x1xf32>
    %251 = arith.divf %249, %250 : vector<8x1xf32>
    %252 = vector.broadcast %251 : vector<8x1xf32> to vector<8x32xf32>
    %253 = arith.subf %241, %252 : vector<8x32xf32>
    %254 = arith.mulf %253, %253 : vector<8x32xf32>
    %cst_93 = arith.constant dense<0.000000e+00> : vector<8xf32>
    %255 = vector.multi_reduction <add>, %254, %cst_93 [1] : vector<8x32xf32> to vector<8xf32>
    %256 = vector.shape_cast %255 : vector<8xf32> to vector<8x1xf32>
    %cst_94 = arith.constant 3.200000e+01 : f32
    %257 = vector.broadcast %cst_94 : f32 to vector<8x1xf32>
    %258 = arith.divf %256, %257 : vector<8x1xf32>
    %259 = vector.broadcast %251 : vector<8x1xf32> to vector<8x32xf32>
    %260 = arith.subf %241, %259 : vector<8x32xf32>
    %cst_95 = arith.constant 9.99999974E-6 : f32
    %261 = vector.broadcast %cst_95 : f32 to vector<8x1xf32>
    %262 = arith.addf %258, %261 : vector<8x1xf32>
    %263 = math.rsqrt %262 : vector<8x1xf32>
    %264 = vector.broadcast %263 : vector<8x1xf32> to vector<8x32xf32>
    %265 = arith.mulf %260, %264 : vector<8x32xf32>
    %266 = vector.broadcast %244 : vector<1x32xf32> to vector<8x32xf32>
    %267 = arith.mulf %265, %266 : vector<8x32xf32>
    %268 = vector.broadcast %247 : vector<1x32xf32> to vector<8x32xf32>
    %269 = arith.addf %267, %268 : vector<8x32xf32>
    %270 = arith.addf %137, %269 : vector<8x32xf32>
    %c2_i32 = arith.constant 2 : i32
    %c0_96 = arith.constant 0 : index
    %c0_97 = arith.constant 0 : index
    %271 = vector.load %arg14[%c0_96, %c0_97] : memref<1x32xf32, #tpu.memory_space<vmem>>, vector<1x32xf32>
    %c0_98 = arith.constant 0 : index
    %c0_99 = arith.constant 0 : index
    %272 = vector.load %arg15[%c0_98, %c0_99] : memref<1x32xf32, #tpu.memory_space<vmem>>, vector<1x32xf32>
    %cst_100 = arith.constant dense<0.000000e+00> : vector<8xf32>
    %273 = vector.multi_reduction <add>, %270, %cst_100 [1] : vector<8x32xf32> to vector<8xf32>
    %274 = vector.shape_cast %273 : vector<8xf32> to vector<8x1xf32>
    %cst_101 = arith.constant 3.200000e+01 : f32
    %275 = vector.broadcast %cst_101 : f32 to vector<8x1xf32>
    %276 = arith.divf %274, %275 : vector<8x1xf32>
    %277 = vector.broadcast %276 : vector<8x1xf32> to vector<8x32xf32>
    %278 = arith.subf %270, %277 : vector<8x32xf32>
    %279 = arith.mulf %278, %278 : vector<8x32xf32>
    %cst_102 = arith.constant dense<0.000000e+00> : vector<8xf32>
    %280 = vector.multi_reduction <add>, %279, %cst_102 [1] : vector<8x32xf32> to vector<8xf32>
    %281 = vector.shape_cast %280 : vector<8xf32> to vector<8x1xf32>
    %cst_103 = arith.constant 3.200000e+01 : f32
    %282 = vector.broadcast %cst_103 : f32 to vector<8x1xf32>
    %283 = arith.divf %281, %282 : vector<8x1xf32>
    %284 = vector.broadcast %276 : vector<8x1xf32> to vector<8x32xf32>
    %285 = arith.subf %270, %284 : vector<8x32xf32>
    %cst_104 = arith.constant 9.99999974E-6 : f32
    %286 = vector.broadcast %cst_104 : f32 to vector<8x1xf32>
    %287 = arith.addf %283, %286 : vector<8x1xf32>
    %288 = math.rsqrt %287 : vector<8x1xf32>
    %289 = vector.broadcast %288 : vector<8x1xf32> to vector<8x32xf32>
    %290 = arith.mulf %285, %289 : vector<8x32xf32>
    %291 = vector.broadcast %271 : vector<1x32xf32> to vector<8x32xf32>
    %292 = arith.mulf %290, %291 : vector<8x32xf32>
    %293 = vector.broadcast %272 : vector<1x32xf32> to vector<8x32xf32>
    %294 = arith.addf %292, %293 : vector<8x32xf32>
    %c0_105 = arith.constant 0 : index
    %c0_106 = arith.constant 0 : index
    %295 = vector.load %arg20[%c0_105, %c0_106] : memref<8x32xf32, #tpu.memory_space<vmem>>, vector<8x32xf32>
    tpu.vector_store %arg20[%c0_105, %c0_106], %294 {strides = array<i32>} : memref<8x32xf32, #tpu.memory_space<vmem>>, vector<8x32xf32>,
    return
  }
  func.func @transform_0(%arg0: i32) -> (i32, i32) {
    %c0_i32 = arith.constant 0 : i32
    %c0_i32_0 = arith.constant 0 : i32
    return %arg0, %c0_i32 : i32, i32
  }
  func.func @transform_1(%arg0: i32) -> (i32, i32, i32) {
    %c0_i32 = arith.constant 0 : i32
    %c0_i32_0 = arith.constant 0 : i32
    %c0_i32_1 = arith.constant 0 : i32
    %c0_i32_2 = arith.constant 0 : i32
    return %c0_i32, %c0_i32_0, %c0_i32_1 : i32, i32, i32
  }
  func.func @transform_2(%arg0: i32) -> (i32, i32, i32) {
    %c0_i32 = arith.constant 0 : i32
    %c0_i32_0 = arith.constant 0 : i32
    %c0_i32_1 = arith.constant 0 : i32
    %c0_i32_2 = arith.constant 0 : i32
    return %c0_i32, %c0_i32_0, %c0_i32_1 : i32, i32, i32
  }
  func.func @transform_3(%arg0: i32) -> (i32, i32, i32) {
    %c0_i32 = arith.constant 0 : i32
    %c0_i32_0 = arith.constant 0 : i32
    %c0_i32_1 = arith.constant 0 : i32
    %c0_i32_2 = arith.constant 0 : i32
    return %c0_i32, %c0_i32_0, %c0_i32_1 : i32, i32, i32
  }
  func.func @transform_4(%arg0: i32) -> (i32, i32, i32) {
    %c0_i32 = arith.constant 0 : i32
    %c0_i32_0 = arith.constant 0 : i32
    %c0_i32_1 = arith.constant 0 : i32
    %c0_i32_2 = arith.constant 0 : i32
    return %c0_i32, %c0_i32_0, %c0_i32_1 : i32, i32, i32
  }
  func.func @transform_5(%arg0: i32) -> (i32, i32, i32) {
    %c0_i32 = arith.constant 0 : i32
    %c0_i32_0 = arith.constant 0 : i32
    %c0_i32_1 = arith.constant 0 : i32
    %c0_i32_2 = arith.constant 0 : i32
    return %c0_i32, %c0_i32_0, %c0_i32_1 : i32, i32, i32
  }
  func.func @transform_6(%arg0: i32) -> (i32, i32, i32) {
    %c0_i32 = arith.constant 0 : i32
    %c0_i32_0 = arith.constant 0 : i32
    %c0_i32_1 = arith.constant 0 : i32
    %c0_i32_2 = arith.constant 0 : i32
    return %c0_i32, %c0_i32_0, %c0_i32_1 : i32, i32, i32
  }
  func.func @transform_7(%arg0: i32) -> (i32, i32, i32) {
    %c0_i32 = arith.constant 0 : i32
    %c0_i32_0 = arith.constant 0 : i32
    %c0_i32_1 = arith.constant 0 : i32
    %c0_i32_2 = arith.constant 0 : i32
    return %c0_i32, %c0_i32_0, %c0_i32_1 : i32, i32, i32
  }
  func.func @transform_8(%arg0: i32) -> (i32, i32, i32) {
    %c0_i32 = arith.constant 0 : i32
    %c0_i32_0 = arith.constant 0 : i32
    %c0_i32_1 = arith.constant 0 : i32
    %c0_i32_2 = arith.constant 0 : i32
    return %c0_i32, %c0_i32_0, %c0_i32_1 : i32, i32, i32
  }
  func.func @transform_9(%arg0: i32) -> (i32, i32, i32) {
    %c0_i32 = arith.constant 0 : i32
    %c0_i32_0 = arith.constant 0 : i32
    %c0_i32_1 = arith.constant 0 : i32
    %c0_i32_2 = arith.constant 0 : i32
    return %c0_i32, %c0_i32_0, %c0_i32_1 : i32, i32, i32
  }
  func.func @transform_10(%arg0: i32) -> (i32, i32, i32) {
    %c0_i32 = arith.constant 0 : i32
    %c0_i32_0 = arith.constant 0 : i32
    %c0_i32_1 = arith.constant 0 : i32
    %c0_i32_2 = arith.constant 0 : i32
    return %c0_i32, %c0_i32_0, %c0_i32_1 : i32, i32, i32
  }
  func.func @transform_11(%arg0: i32) -> (i32, i32, i32) {
    %c0_i32 = arith.constant 0 : i32
    %c0_i32_0 = arith.constant 0 : i32
    %c0_i32_1 = arith.constant 0 : i32
    %c0_i32_2 = arith.constant 0 : i32
    return %c0_i32, %c0_i32_0, %c0_i32_1 : i32, i32, i32
  }
  func.func @transform_12(%arg0: i32) -> (i32, i32, i32) {
    %c0_i32 = arith.constant 0 : i32
    %c0_i32_0 = arith.constant 0 : i32
    %c0_i32_1 = arith.constant 0 : i32
    %c0_i32_2 = arith.constant 0 : i32
    return %c0_i32, %c0_i32_0, %c0_i32_1 : i32, i32, i32
  }
  func.func @transform_13(%arg0: i32) -> (i32, i32) {
    %c0_i32 = arith.constant 0 : i32
    %c0_i32_0 = arith.constant 0 : i32
    %c0_i32_1 = arith.constant 0 : i32
    return %c0_i32, %c0_i32_0 : i32, i32
  }
  func.func @transform_14(%arg0: i32) -> (i32, i32) {
    %c0_i32 = arith.constant 0 : i32
    %c0_i32_0 = arith.constant 0 : i32
    %c0_i32_1 = arith.constant 0 : i32
    return %c0_i32, %c0_i32_0 : i32, i32
  }
  func.func @transform_15(%arg0: i32) -> (i32, i32) {
    %c0_i32 = arith.constant 0 : i32
    %c0_i32_0 = arith.constant 0 : i32
    %c0_i32_1 = arith.constant 0 : i32
    return %c0_i32, %c0_i32_0 : i32, i32
  }
  func.func @transform_16(%arg0: i32) -> (i32, i32) {
    %c0_i32 = arith.constant 0 : i32
    %c0_i32_0 = arith.constant 0 : i32
    %c0_i32_1 = arith.constant 0 : i32
    return %c0_i32, %c0_i32_0 : i32, i32
  }
  func.func @transform_17(%arg0: i32) -> (i32, i32) {
    %c0_i32 = arith.constant 0 : i32
    %c0_i32_0 = arith.constant 0 : i32
    %c0_i32_1 = arith.constant 0 : i32
    return %c0_i32, %c0_i32_0 : i32, i32
  }
  func.func @transform_18(%arg0: i32) -> (i32, i32) {
    %c0_i32 = arith.constant 0 : i32
    %c0_i32_0 = arith.constant 0 : i32
    %c0_i32_1 = arith.constant 0 : i32
    return %c0_i32, %c0_i32_0 : i32, i32
  }
  func.func @transform_19(%arg0: i32) -> (i32, i32) {
    %c0_i32 = arith.constant 0 : i32
    %c0_i32_0 = arith.constant 0 : i32
    return %arg0, %c0_i32 : i32, i32
  }
}

</mosaic_0001>

<llo_original>
// kernel: tpu_custom_call.1
$region0: #{tpu_custom_call.1}
  #allocation0 [shape = 'u32[]', space=smem, size = 0x4, offset = 0x4, fixed_abs, tag = 'smem constant byte address 0x4 - core index']
  #allocation1 [shape = 'u32[144,128]{1,0:T(1,128)}', space=vmem, size = 0x12000, scoped, tag = 'internal scratch']
  %s0 = inlined_call_operand.vmem [shape: f32[16,32], index: 0, kind: input, shape index: {}]
  %s1 = inlined_call_operand.vmem [shape: bf16[2,32,384], index: 1, kind: input, shape index: {}]
  %s2 = inlined_call_operand.vmem [shape: f32[2,1,384], index: 2, kind: input, shape index: {}]
  %s3 = inlined_call_operand.vmem [shape: bf16[2,32,32], index: 3, kind: input, shape index: {}]
  %s4 = inlined_call_operand.vmem [shape: f32[2,1,32], index: 4, kind: input, shape index: {}]
  %s5 = inlined_call_operand.vmem [shape: f32[2,1,32], index: 5, kind: input, shape index: {}]
  %s6 = inlined_call_operand.vmem [shape: f32[2,1,32], index: 6, kind: input, shape index: {}]
  %s7 = inlined_call_operand.vmem [shape: bf16[2,32,64], index: 7, kind: input, shape index: {}]
  %s8 = inlined_call_operand.vmem [shape: f32[2,1,64], index: 8, kind: input, shape index: {}]
  %s9 = inlined_call_operand.vmem [shape: bf16[2,64,32], index: 9, kind: input, shape index: {}]
  %s10 = inlined_call_operand.vmem [shape: f32[2,1,32], index: 10, kind: input, shape index: {}]
  %s11 = inlined_call_operand.vmem [shape: f32[2,1,32], index: 11, kind: input, shape index: {}]
  %s12 = inlined_call_operand.vmem [shape: f32[2,1,32], index: 12, kind: input, shape index: {}]
  %s13 = inlined_call_operand.vmem [shape: f32[1,32], index: 13, kind: input, shape index: {}]
  %s14 = inlined_call_operand.vmem [shape: f32[1,32], index: 14, kind: input, shape index: {}]
  %s15 = inlined_call_operand.vmem [shape: bf16[128,16], index: 15, kind: input, shape index: {}]
  %s16 = inlined_call_operand.vmem [shape: bf16[4,16], index: 16, kind: input, shape index: {}]
  %s17 = inlined_call_operand.vmem [shape: bf16[16,128], index: 17, kind: input, shape index: {}]
  %s18 = inlined_call_operand.vmem [shape: bf16[128,32], index: 18, kind: input, shape index: {}]
  %s19 = inlined_call_operand.hbm [shape: f32[16,32], index: 19, kind: output, shape index: {}]
  %s20 = sld [smem:[#allocation0]]
  $region109: #{tpu_custom_call.1} parent=0
    _
  %s22 = ssub.s32 1, %s20
  %s23 = scalar_select 0, %s22, %s20
  $region1: #{tpu_custom_call.1} parent=0
    #allocation2 [shape = 'u8[8192]{0}', space=vmem, size = 0x2000, scoped, tag = 'output window, operand 0']
    #allocation3 [shape = 's32[2]{0}', space=sflag, size = 0x8, scoped, tag = 'scoped memory for tpu_custom_call.1']
    %24 = vsyncpa [#allocation3], 0
    %s25 = scalar_lea.sflag [#allocation3], 1
    %26 = vsyncpa %s25, 0
    loop: start=0, step=1, limit=4
    $region2: #{tpu_custom_call.1} parent=1 // loop_pre_header
      _
    $region3: #{tpu_custom_call.1} parent=1 // loop_header
      %s28 = sphi 0, %s32
      %p29 = scmp.ge.s32.totalorder %s28, 4
      %s38 = sphi 0, %s40
      %s41 = sphi 0, %s38
      %s42 = sphi 0, %s41
      %s58 = sphi 0, %s42
      %s62 = sphi 0, %s62
      %s64 = sphi 0, %s62
      %s65 = sphi 0, %s64
      %s79 = sphi 0, %s65
      %s83 = sphi 0, %s83
      %s85 = sphi 0, %s83
      %s86 = sphi 0, %s85
      %s100 = sphi 0, %s86
      %s104 = sphi 0, %s104
      %s106 = sphi 0, %s104
      %s107 = sphi 0, %s106
      %s121 = sphi 0, %s107
      %s125 = sphi 0, %s125
      %s127 = sphi 0, %s125
      %s128 = sphi 0, %s127
      %s142 = sphi 0, %s128
      %s146 = sphi 0, %s146
      %s148 = sphi 0, %s146
      %s149 = sphi 0, %s148
      %s163 = sphi 0, %s149
      %s167 = sphi 0, %s167
      %s169 = sphi 0, %s167
      %s170 = sphi 0, %s169
      %s184 = sphi 0, %s170
      %s188 = sphi 0, %s188
      %s190 = sphi 0, %s188
      %s191 = sphi 0, %s190
      %s205 = sphi 0, %s191
      %s209 = sphi 0, %s209
      %s211 = sphi 0, %s209
      %s212 = sphi 0, %s211
      %s226 = sphi 0, %s212
      %s230 = sphi 0, %s230
      %s232 = sphi 0, %s230
      %s233 = sphi 0, %s232
      %s247 = sphi 0, %s233
      %s251 = sphi 0, %s251
      %s253 = sphi 0, %s251
      %s254 = sphi 0, %s253
      %s268 = sphi 0, %s254
      %s272 = sphi 0, %s272
      %s274 = sphi 0, %s272
      %s275 = sphi 0, %s274
      %s289 = sphi 0, %s275
      %s293 = sphi 0, %s293
      %s295 = sphi 0, %s293
      %s296 = sphi 0, %s295
      %s310 = sphi 0, %s296
      %s314 = sphi 0, %s314
      %s316 = sphi 0, %s314
      %s317 = sphi 0, %s316
      %s331 = sphi 0, %s317
      %s335 = sphi 0, %s335
      %s337 = sphi 0, %s335
      %s338 = sphi 0, %s337
      %s352 = sphi 0, %s338
      %s356 = sphi 0, %s356
      %s358 = sphi 0, %s356
      %s359 = sphi 0, %s358
      %s373 = sphi 0, %s359
      %s377 = sphi 0, %s377
      %s379 = sphi 0, %s377
      %s380 = sphi 0, %s379
      %s394 = sphi 0, %s380
      %s398 = sphi 0, %s398
      %s400 = sphi 0, %s398
      %s401 = sphi 0, %s400
      %s415 = sphi 0, %s401
      %s419 = sphi 0, %s419
      %s421 = sphi 0, %s419
      %s422 = sphi 0, %s421
      %s436 = sphi 0, %s422
      %s442 = sphi 0, %s444
      %s445 = sphi 0, %s442
      %s446 = sphi 0, %s445
      %s462 = sphi 0, %s446
    $region4: #{tpu_custom_call.1} parent=1 // loop_header_branch
      %31 = sbr.rel (%p29) target = $region8
    $region5: #{tpu_custom_call.1} parent=1 // loop_body
      %s33 = ssub.s32 %s28, 1
      %s34 = ssub.s32 %s28, 2
      %s35 = sadd.s32 %s28, 1
      %s36 = ssub.s32 %s28, %s35
      %p37 = scmp.eq.s32.totalorder %s36, 0
      %s39 = sadd.s32 %s38, 1
      %s40 = scalar_select %p37, %s38, %s39
      %p43 = pneg %p37
      %p44 = scmp.eq.s32.totalorder %s28, 1
      %p45 = por %p43, %p44
      %p46 = scmp.ne.s32.totalorder %s38, %s41
      %p47 = scmp.eq.s32.totalorder %s28, 0
      %p48 = por %p46, %p47
      %p49 = scmp.ne.s32.totalorder %s38, %s41
      %p50 = scmp.eq.s32.totalorder %s33, 1
      %p51 = por %p49, %p50
      %p52 = scmp.ne.s32.totalorder %s41, %s42
      %p53 = scmp.eq.s32.totalorder %s33, 0
      %p54 = por %p52, %p53
      %p55 = scmp.ne.s32.totalorder %s41, %s42
      %p56 = scmp.eq.s32.totalorder %s34, 1
      %p57 = por %p55, %p56
      %p59 = scmp.ne.s32.totalorder %s42, %s58
      %p60 = scmp.eq.s32.totalorder %s34, 0
      %p61 = por %p59, %p60
      %s63 = sadd.s32 %s62, 1
      %p66 = scmp.eq.s32.totalorder %s28, 1
      %p67 = scmp.ne.s32.totalorder %s62, %s64
      %p68 = scmp.eq.s32.totalorder %s28, 0
      %p69 = por %p67, %p68
      %p70 = scmp.ne.s32.totalorder %s62, %s64
      %p71 = scmp.eq.s32.totalorder %s33, 1
      %p72 = por %p70, %p71
      %p73 = scmp.ne.s32.totalorder %s64, %s65
      %p74 = scmp.eq.s32.totalorder %s33, 0
      %p75 = por %p73, %p74
      %p76 = scmp.ne.s32.totalorder %s64, %s65
      %p77 = scmp.eq.s32.totalorder %s34, 1
      %p78 = por %p76, %p77
      %p80 = scmp.ne.s32.totalorder %s65, %s79
      %p81 = scmp.eq.s32.totalorder %s34, 0
      %p82 = por %p80, %p81
      %s84 = sadd.s32 %s83, 1
      %p87 = scmp.eq.s32.totalorder %s28, 1
      %p88 = scmp.ne.s32.totalorder %s83, %s85
      %p89 = scmp.eq.s32.totalorder %s28, 0
      %p90 = por %p88, %p89
      %p91 = scmp.ne.s32.totalorder %s83, %s85
      %p92 = scmp.eq.s32.totalorder %s33, 1
      %p93 = por %p91, %p92
      %p94 = scmp.ne.s32.totalorder %s85, %s86
      %p95 = scmp.eq.s32.totalorder %s33, 0
      %p96 = por %p94, %p95
      %p97 = scmp.ne.s32.totalorder %s85, %s86
      %p98 = scmp.eq.s32.totalorder %s34, 1
      %p99 = por %p97, %p98
      %p101 = scmp.ne.s32.totalorder %s86, %s100
      %p102 = scmp.eq.s32.totalorder %s34, 0
      %p103 = por %p101, %p102
      %s105 = sadd.s32 %s104, 1
      %p108 = scmp.eq.s32.totalorder %s28, 1
      %p109 = scmp.ne.s32.totalorder %s104, %s106
      %p110 = scmp.eq.s32.totalorder %s28, 0
      %p111 = por %p109, %p110
      %p112 = scmp.ne.s32.totalorder %s104, %s106
      %p113 = scmp.eq.s32.totalorder %s33, 1
      %p114 = por %p112, %p113
      %p115 = scmp.ne.s32.totalorder %s106, %s107
      %p116 = scmp.eq.s32.totalorder %s33, 0
      %p117 = por %p115, %p116
      %p118 = scmp.ne.s32.totalorder %s106, %s107
      %p119 = scmp.eq.s32.totalorder %s34, 1
      %p120 = por %p118, %p119
      %p122 = scmp.ne.s32.totalorder %s107, %s121
      %p123 = scmp.eq.s32.totalorder %s34, 0
      %p124 = por %p122, %p123
      %s126 = sadd.s32 %s125, 1
      %p129 = scmp.eq.s32.totalorder %s28, 1
      %p130 = scmp.ne.s32.totalorder %s125, %s127
      %p131 = scmp.eq.s32.totalorder %s28, 0
      %p132 = por %p130, %p131
      %p133 = scmp.ne.s32.totalorder %s125, %s127
      %p134 = scmp.eq.s32.totalorder %s33, 1
      %p135 = por %p133, %p134
      %p136 = scmp.ne.s32.totalorder %s127, %s128
      %p137 = scmp.eq.s32.totalorder %s33, 0
      %p138 = por %p136, %p137
      %p139 = scmp.ne.s32.totalorder %s127, %s128
      %p140 = scmp.eq.s32.totalorder %s34, 1
      %p141 = por %p139, %p140
      %p143 = scmp.ne.s32.totalorder %s128, %s142
      %p144 = scmp.eq.s32.totalorder %s34, 0
      %p145 = por %p143, %p144
      %s147 = sadd.s32 %s146, 1
      %p150 = scmp.eq.s32.totalorder %s28, 1
      %p151 = scmp.ne.s32.totalorder %s146, %s148
      %p152 = scmp.eq.s32.totalorder %s28, 0
      %p153 = por %p151, %p152
      %p154 = scmp.ne.s32.totalorder %s146, %s148
      %p155 = scmp.eq.s32.totalorder %s33, 1
      %p156 = por %p154, %p155
      %p157 = scmp.ne.s32.totalorder %s148, %s149
      %p158 = scmp.eq.s32.totalorder %s33, 0
      %p159 = por %p157, %p158
      %p160 = scmp.ne.s32.totalorder %s148, %s149
      %p161 = scmp.eq.s32.totalorder %s34, 1
      %p162 = por %p160, %p161
      %p164 = scmp.ne.s32.totalorder %s149, %s163
      %p165 = scmp.eq.s32.totalorder %s34, 0
      %p166 = por %p164, %p165
      %s168 = sadd.s32 %s167, 1
      %p171 = scmp.eq.s32.totalorder %s28, 1
      %p172 = scmp.ne.s32.totalorder %s167, %s169
      %p173 = scmp.eq.s32.totalorder %s28, 0
      %p174 = por %p172, %p173
      %p175 = scmp.ne.s32.totalorder %s167, %s169
      %p176 = scmp.eq.s32.totalorder %s33, 1
      %p177 = por %p175, %p176
      %p178 = scmp.ne.s32.totalorder %s169, %s170
      %p179 = scmp.eq.s32.totalorder %s33, 0
      %p180 = por %p178, %p179
      %p181 = scmp.ne.s32.totalorder %s169, %s170
      %p182 = scmp.eq.s32.totalorder %s34, 1
      %p183 = por %p181, %p182
      %p185 = scmp.ne.s32.totalorder %s170, %s184
      %p186 = scmp.eq.s32.totalorder %s34, 0
      %p187 = por %p185, %p186
      %s189 = sadd.s32 %s188, 1
      %p192 = scmp.eq.s32.totalorder %s28, 1
      %p193 = scmp.ne.s32.totalorder %s188, %s190
      %p194 = scmp.eq.s32.totalorder %s28, 0
      %p195 = por %p193, %p194
      %p196 = scmp.ne.s32.totalorder %s188, %s190
      %p197 = scmp.eq.s32.totalorder %s33, 1
      %p198 = por %p196, %p197
      %p199 = scmp.ne.s32.totalorder %s190, %s191
      %p200 = scmp.eq.s32.totalorder %s33, 0
      %p201 = por %p199, %p200
      %p202 = scmp.ne.s32.totalorder %s190, %s191
      %p203 = scmp.eq.s32.totalorder %s34, 1
      %p204 = por %p202, %p203
      %p206 = scmp.ne.s32.totalorder %s191, %s205
      %p207 = scmp.eq.s32.totalorder %s34, 0
      %p208 = por %p206, %p207
      %s210 = sadd.s32 %s209, 1
      %p213 = scmp.eq.s32.totalorder %s28, 1
      %p214 = scmp.ne.s32.totalorder %s209, %s211
      %p215 = scmp.eq.s32.totalorder %s28, 0
      %p216 = por %p214, %p215
      %p217 = scmp.ne.s32.totalorder %s209, %s211
      %p218 = scmp.eq.s32.totalorder %s33, 1
      %p219 = por %p217, %p218
      %p220 = scmp.ne.s32.totalorder %s211, %s212
      %p221 = scmp.eq.s32.totalorder %s33, 0
      %p222 = por %p220, %p221
      %p223 = scmp.ne.s32.totalorder %s211, %s212
      %p224 = scmp.eq.s32.totalorder %s34, 1
      %p225 = por %p223, %p224
      %p227 = scmp.ne.s32.totalorder %s212, %s226
      %p228 = scmp.eq.s32.totalorder %s34, 0
      %p229 = por %p227, %p228
      %s231 = sadd.s32 %s230, 1
      %p234 = scmp.eq.s32.totalorder %s28, 1
      %p235 = scmp.ne.s32.totalorder %s230, %s232
      %p236 = scmp.eq.s32.totalorder %s28, 0
      %p237 = por %p235, %p236
      %p238 = scmp.ne.s32.totalorder %s230, %s232
      %p239 = scmp.eq.s32.totalorder %s33, 1
      %p240 = por %p238, %p239
      %p241 = scmp.ne.s32.totalorder %s232, %s233
      %p242 = scmp.eq.s32.totalorder %s33, 0
      %p243 = por %p241, %p242
      %p244 = scmp.ne.s32.totalorder %s232, %s233
      %p245 = scmp.eq.s32.totalorder %s34, 1
      %p246 = por %p244, %p245
      %p248 = scmp.ne.s32.totalorder %s233, %s247
      %p249 = scmp.eq.s32.totalorder %s34, 0
      %p250 = por %p248, %p249
      %s252 = sadd.s32 %s251, 1
      %p255 = scmp.eq.s32.totalorder %s28, 1
      %p256 = scmp.ne.s32.totalorder %s251, %s253
      %p257 = scmp.eq.s32.totalorder %s28, 0
      %p258 = por %p256, %p257
      %p259 = scmp.ne.s32.totalorder %s251, %s253
      %p260 = scmp.eq.s32.totalorder %s33, 1
      %p261 = por %p259, %p260
      %p262 = scmp.ne.s32.totalorder %s253, %s254
      %p263 = scmp.eq.s32.totalorder %s33, 0
      %p264 = por %p262, %p263
      %p265 = scmp.ne.s32.totalorder %s253, %s254
      %p266 = scmp.eq.s32.totalorder %s34, 1
      %p267 = por %p265, %p266
      %p269 = scmp.ne.s32.totalorder %s254, %s268
      %p270 = scmp.eq.s32.totalorder %s34, 0
      %p271 = por %p269, %p270
      %s273 = sadd.s32 %s272, 1
      %p276 = scmp.eq.s32.totalorder %s28, 1
      %p277 = scmp.ne.s32.totalorder %s272, %s274
      %p278 = scmp.eq.s32.totalorder %s28, 0
      %p279 = por %p277, %p278
      %p280 = scmp.ne.s32.totalorder %s272, %s274
      %p281 = scmp.eq.s32.totalorder %s33, 1
      %p282 = por %p280, %p281
      %p283 = scmp.ne.s32.totalorder %s274, %s275
      %p284 = scmp.eq.s32.totalorder %s33, 0
      %p285 = por %p283, %p284
      %p286 = scmp.ne.s32.totalorder %s274, %s275
      %p287 = scmp.eq.s32.totalorder %s34, 1
      %p288 = por %p286, %p287
      %p290 = scmp.ne.s32.totalorder %s275, %s289
      %p291 = scmp.eq.s32.totalorder %s34, 0
      %p292 = por %p290, %p291
      %s294 = sadd.s32 %s293, 1
      %p297 = scmp.eq.s32.totalorder %s28, 1
      %p298 = scmp.ne.s32.totalorder %s293, %s295
      %p299 = scmp.eq.s32.totalorder %s28, 0
      %p300 = por %p298, %p299
      %p301 = scmp.ne.s32.totalorder %s293, %s295
      %p302 = scmp.eq.s32.totalorder %s33, 1
      %p303 = por %p301, %p302
      %p304 = scmp.ne.s32.totalorder %s295, %s296
      %p305 = scmp.eq.s32.totalorder %s33, 0
      %p306 = por %p304, %p305
      %p307 = scmp.ne.s32.totalorder %s295, %s296
      %p308 = scmp.eq.s32.totalorder %s34, 1
      %p309 = por %p307, %p308
      %p311 = scmp.ne.s32.totalorder %s296, %s310
      %p312 = scmp.eq.s32.totalorder %s34, 0
      %p313 = por %p311, %p312
      %s315 = sadd.s32 %s314, 1
      %p318 = scmp.eq.s32.totalorder %s28, 1
      %p319 = scmp.ne.s32.totalorder %s314, %s316
      %p320 = scmp.eq.s32.totalorder %s28, 0
      %p321 = por %p319, %p320
      %p322 = scmp.ne.s32.totalorder %s314, %s316
      %p323 = scmp.eq.s32.totalorder %s33, 1
      %p324 = por %p322, %p323
      %p325 = scmp.ne.s32.totalorder %s316, %s317
      %p326 = scmp.eq.s32.totalorder %s33, 0
      %p327 = por %p325, %p326
      %p328 = scmp.ne.s32.totalorder %s316, %s317
      %p329 = scmp.eq.s32.totalorder %s34, 1
      %p330 = por %p328, %p329
      %p332 = scmp.ne.s32.totalorder %s317, %s331
      %p333 = scmp.eq.s32.totalorder %s34, 0
      %p334 = por %p332, %p333
      %s336 = sadd.s32 %s335, 1
      %p339 = scmp.eq.s32.totalorder %s28, 1
      %p340 = scmp.ne.s32.totalorder %s335, %s337
      %p341 = scmp.eq.s32.totalorder %s28, 0
      %p342 = por %p340, %p341
      %p343 = scmp.ne.s32.totalorder %s335, %s337
      %p344 = scmp.eq.s32.totalorder %s33, 1
      %p345 = por %p343, %p344
      %p346 = scmp.ne.s32.totalorder %s337, %s338
      %p347 = scmp.eq.s32.totalorder %s33, 0
      %p348 = por %p346, %p347
      %p349 = scmp.ne.s32.totalorder %s337, %s338
      %p350 = scmp.eq.s32.totalorder %s34, 1
      %p351 = por %p349, %p350
      %p353 = scmp.ne.s32.totalorder %s338, %s352
      %p354 = scmp.eq.s32.totalorder %s34, 0
      %p355 = por %p353, %p354
      %s357 = sadd.s32 %s356, 1
      %p360 = scmp.eq.s32.totalorder %s28, 1
      %p361 = scmp.ne.s32.totalorder %s356, %s358
      %p362 = scmp.eq.s32.totalorder %s28, 0
      %p363 = por %p361, %p362
      %p364 = scmp.ne.s32.totalorder %s356, %s358
      %p365 = scmp.eq.s32.totalorder %s33, 1
      %p366 = por %p364, %p365
      %p367 = scmp.ne.s32.totalorder %s358, %s359
      %p368 = scmp.eq.s32.totalorder %s33, 0
      %p369 = por %p367, %p368
      %p370 = scmp.ne.s32.totalorder %s358, %s359
      %p371 = scmp.eq.s32.totalorder %s34, 1
      %p372 = por %p370, %p371
      %p374 = scmp.ne.s32.totalorder %s359, %s373
      %p375 = scmp.eq.s32.totalorder %s34, 0
      %p376 = por %p374, %p375
      %s378 = sadd.s32 %s377, 1
      %p381 = scmp.eq.s32.totalorder %s28, 1
      %p382 = scmp.ne.s32.totalorder %s377, %s379
      %p383 = scmp.eq.s32.totalorder %s28, 0
      %p384 = por %p382, %p383
      %p385 = scmp.ne.s32.totalorder %s377, %s379
      %p386 = scmp.eq.s32.totalorder %s33, 1
      %p387 = por %p385, %p386
      %p388 = scmp.ne.s32.totalorder %s379, %s380
      %p389 = scmp.eq.s32.totalorder %s33, 0
      %p390 = por %p388, %p389
      %p391 = scmp.ne.s32.totalorder %s379, %s380
      %p392 = scmp.eq.s32.totalorder %s34, 1
      %p393 = por %p391, %p392
      %p395 = scmp.ne.s32.totalorder %s380, %s394
      %p396 = scmp.eq.s32.totalorder %s34, 0
      %p397 = por %p395, %p396
      %s399 = sadd.s32 %s398, 1
      %p402 = scmp.eq.s32.totalorder %s28, 1
      %p403 = scmp.ne.s32.totalorder %s398, %s400
      %p404 = scmp.eq.s32.totalorder %s28, 0
      %p405 = por %p403, %p404
      %p406 = scmp.ne.s32.totalorder %s398, %s400
      %p407 = scmp.eq.s32.totalorder %s33, 1
      %p408 = por %p406, %p407
      %p409 = scmp.ne.s32.totalorder %s400, %s401
      %p410 = scmp.eq.s32.totalorder %s33, 0
      %p411 = por %p409, %p410
      %p412 = scmp.ne.s32.totalorder %s400, %s401
      %p413 = scmp.eq.s32.totalorder %s34, 1
      %p414 = por %p412, %p413
      %p416 = scmp.ne.s32.totalorder %s401, %s415
      %p417 = scmp.eq.s32.totalorder %s34, 0
      %p418 = por %p416, %p417
      %s420 = sadd.s32 %s419, 1
      %p423 = scmp.eq.s32.totalorder %s28, 1
      %p424 = scmp.ne.s32.totalorder %s419, %s421
      %p425 = scmp.eq.s32.totalorder %s28, 0
      %p426 = por %p424, %p425
      %p427 = scmp.ne.s32.totalorder %s419, %s421
      %p428 = scmp.eq.s32.totalorder %s33, 1
      %p429 = por %p427, %p428
      %p430 = scmp.ne.s32.totalorder %s421, %s422
      %p431 = scmp.eq.s32.totalorder %s33, 0
      %p432 = por %p430, %p431
      %p433 = scmp.ne.s32.totalorder %s421, %s422
      %p434 = scmp.eq.s32.totalorder %s34, 1
      %p435 = por %p433, %p434
      %p437 = scmp.ne.s32.totalorder %s422, %s436
      %p438 = scmp.eq.s32.totalorder %s34, 0
      %p439 = por %p437, %p438
      %s440 = ssub.s32 %s28, %s35
      %p441 = scmp.eq.s32.totalorder %s440, 0
      %s443 = sadd.s32 %s442, 1
      %s444 = scalar_select %p441, %s442, %s443
      %p447 = pneg %p441
      %p448 = scmp.eq.s32.totalorder %s28, 1
      %p449 = por %p447, %p448
      %p450 = scmp.ne.s32.totalorder %s442, %s445
      %p451 = scmp.eq.s32.totalorder %s28, 0
      %p452 = por %p450, %p451
      %p453 = scmp.ne.s32.totalorder %s442, %s445
      %p454 = scmp.eq.s32.totalorder %s33, 1
      %p455 = por %p453, %p454
      %p456 = scmp.ne.s32.totalorder %s445, %s446
      %p457 = scmp.eq.s32.totalorder %s33, 0
      %p458 = por %p456, %p457
      %p459 = scmp.ne.s32.totalorder %s445, %s446
      %p460 = scmp.eq.s32.totalorder %s34, 1
      %p461 = por %p459, %p460
      %p463 = scmp.ne.s32.totalorder %s446, %s462
      %p464 = scmp.eq.s32.totalorder %s34, 0
      %p465 = por %p463, %p464
      %p466 = scmp.le.s32.totalorder 1, %s28
      %p467 = scmp.lt.s32.totalorder %s28, 3
      %p468 = pnand %p466, %p467
      %p469 = pneg %p468
      // Predicated region
      $region9: #{tpu_custom_call.1} parent=5 // pred_check
        _
      $region10: #{tpu_custom_call.1} parent=5 // pred_check_branch
        %471 = sbr.rel (%p468) target = $region12
      $region11: #{tpu_custom_call.1} parent=5 // pred_region
        %s472 = ssub.s32 %s28, 1
        // Predicated region
        $region13: #{tpu_custom_call.1} parent=11 // pred_check
          %p473 = pneg %p75
        $region14: #{tpu_custom_call.1} parent=11 // pred_check_branch
          %475 = sbr.rel (%p473) target = $region16
        $region15: #{tpu_custom_call.1} parent=11 // pred_region
          _
        $region16: #{tpu_custom_call.1} parent=11 // pred_fallthru
          _
        // Predicated region
        $region17: #{tpu_custom_call.1} parent=11 // pred_check
          %p476 = pneg %p96
        $region18: #{tpu_custom_call.1} parent=11 // pred_check_branch
          %478 = sbr.rel (%p476) target = $region20
        $region19: #{tpu_custom_call.1} parent=11 // pred_region
          _
        $region20: #{tpu_custom_call.1} parent=11 // pred_fallthru
          _
        // Predicated region
        $region21: #{tpu_custom_call.1} parent=11 // pred_check
          %p479 = pneg %p117
        $region22: #{tpu_custom_call.1} parent=11 // pred_check_branch
          %481 = sbr.rel (%p479) target = $region24
        $region23: #{tpu_custom_call.1} parent=11 // pred_region
          _
        $region24: #{tpu_custom_call.1} parent=11 // pred_fallthru
          _
        // Predicated region
        $region25: #{tpu_custom_call.1} parent=11 // pred_check
          %p482 = pneg %p138
        $region26: #{tpu_custom_call.1} parent=11 // pred_check_branch
          %484 = sbr.rel (%p482) target = $region28
        $region27: #{tpu_custom_call.1} parent=11 // pred_region
          _
        $region28: #{tpu_custom_call.1} parent=11 // pred_fallthru
          _
        // Predicated region
        $region29: #{tpu_custom_call.1} parent=11 // pred_check
          %p485 = pneg %p159
        $region30: #{tpu_custom_call.1} parent=11 // pred_check_branch
          %487 = sbr.rel (%p485) target = $region32
        $region31: #{tpu_custom_call.1} parent=11 // pred_region
          _
        $region32: #{tpu_custom_call.1} parent=11 // pred_fallthru
          _
        // Predicated region
        $region33: #{tpu_custom_call.1} parent=11 // pred_check
          %p488 = pneg %p180
        $region34: #{tpu_custom_call.1} parent=11 // pred_check_branch
          %490 = sbr.rel (%p488) target = $region36
        $region35: #{tpu_custom_call.1} parent=11 // pred_region
          _
        $region36: #{tpu_custom_call.1} parent=11 // pred_fallthru
          _
        // Predicated region
        $region37: #{tpu_custom_call.1} parent=11 // pred_check
          %p491 = pneg %p201
        $region38: #{tpu_custom_call.1} parent=11 // pred_check_branch
          %493 = sbr.rel (%p491) target = $region40
        $region39: #{tpu_custom_call.1} parent=11 // pred_region
          _
        $region40: #{tpu_custom_call.1} parent=11 // pred_fallthru
          _
        // Predicated region
        $region41: #{tpu_custom_call.1} parent=11 // pred_check
          %p494 = pneg %p222
        $region42: #{tpu_custom_call.1} parent=11 // pred_check_branch
          %496 = sbr.rel (%p494) target = $region44
        $region43: #{tpu_custom_call.1} parent=11 // pred_region
          _
        $region44: #{tpu_custom_call.1} parent=11 // pred_fallthru
          _
        // Predicated region
        $region45: #{tpu_custom_call.1} parent=11 // pred_check
          %p497 = pneg %p243
        $region46: #{tpu_custom_call.1} parent=11 // pred_check_branch
          %499 = sbr.rel (%p497) target = $region48
        $region47: #{tpu_custom_call.1} parent=11 // pred_region
          _
        $region48: #{tpu_custom_call.1} parent=11 // pred_fallthru
          _
        // Predicated region
        $region49: #{tpu_custom_call.1} parent=11 // pred_check
          %p500 = pneg %p264
        $region50: #{tpu_custom_call.1} parent=11 // pred_check_branch
          %502 = sbr.rel (%p500) target = $region52
        $region51: #{tpu_custom_call.1} parent=11 // pred_region
          _
        $region52: #{tpu_custom_call.1} parent=11 // pred_fallthru
          _
        // Predicated region
        $region53: #{tpu_custom_call.1} parent=11 // pred_check
          %p503 = pneg %p285
        $region54: #{tpu_custom_call.1} parent=11 // pred_check_branch
          %505 = sbr.rel (%p503) target = $region56
        $region55: #{tpu_custom_call.1} parent=11 // pred_region
          _
        $region56: #{tpu_custom_call.1} parent=11 // pred_fallthru
          _
        // Predicated region
        $region57: #{tpu_custom_call.1} parent=11 // pred_check
          %p506 = pneg %p306
        $region58: #{tpu_custom_call.1} parent=11 // pred_check_branch
          %508 = sbr.rel (%p506) target = $region60
        $region59: #{tpu_custom_call.1} parent=11 // pred_region
          _
        $region60: #{tpu_custom_call.1} parent=11 // pred_fallthru
          _
        // Predicated region
        $region61: #{tpu_custom_call.1} parent=11 // pred_check
          %p509 = pneg %p327
        $region62: #{tpu_custom_call.1} parent=11 // pred_check_branch
          %511 = sbr.rel (%p509) target = $region64
        $region63: #{tpu_custom_call.1} parent=11 // pred_region
          _
        $region64: #{tpu_custom_call.1} parent=11 // pred_fallthru
          _
        // Predicated region
        $region65: #{tpu_custom_call.1} parent=11 // pred_check
          %p512 = pneg %p348
        $region66: #{tpu_custom_call.1} parent=11 // pred_check_branch
          %514 = sbr.rel (%p512) target = $region68
        $region67: #{tpu_custom_call.1} parent=11 // pred_region
          _
        $region68: #{tpu_custom_call.1} parent=11 // pred_fallthru
          _
        // Predicated region
        $region69: #{tpu_custom_call.1} parent=11 // pred_check
          %p515 = pneg %p369
        $region70: #{tpu_custom_call.1} parent=11 // pred_check_branch
          %517 = sbr.rel (%p515) target = $region72
        $region71: #{tpu_custom_call.1} parent=11 // pred_region
          _
        $region72: #{tpu_custom_call.1} parent=11 // pred_fallthru
          _
        // Predicated region
        $region73: #{tpu_custom_call.1} parent=11 // pred_check
          %p518 = pneg %p390
        $region74: #{tpu_custom_call.1} parent=11 // pred_check_branch
          %520 = sbr.rel (%p518) target = $region76
        $region75: #{tpu_custom_call.1} parent=11 // pred_region
          _
        $region76: #{tpu_custom_call.1} parent=11 // pred_fallthru
          _
        // Predicated region
        $region77: #{tpu_custom_call.1} parent=11 // pred_check
          %p521 = pneg %p411
        $region78: #{tpu_custom_call.1} parent=11 // pred_check_branch
          %523 = sbr.rel (%p521) target = $region80
        $region79: #{tpu_custom_call.1} parent=11 // pred_region
          _
        $region80: #{tpu_custom_call.1} parent=11 // pred_fallthru
          _
        // Predicated region
        $region81: #{tpu_custom_call.1} parent=11 // pred_check
          %p524 = pneg %p432
        $region82: #{tpu_custom_call.1} parent=11 // pred_check_branch
          %526 = sbr.rel (%p524) target = $region84
        $region83: #{tpu_custom_call.1} parent=11 // pred_region
          _
        $region84: #{tpu_custom_call.1} parent=11 // pred_fallthru
          _
      $region12: #{tpu_custom_call.1} parent=5 // pred_fallthru
        _
      %p527 = scmp.lt.s32.totalorder %s28, 2
      // Predicated region
      $region85: #{tpu_custom_call.1} parent=5 // pred_check
        %p528 = pneg %p527
      $region86: #{tpu_custom_call.1} parent=5 // pred_check_branch
        %530 = sbr.rel (%p528) target = $region88
      $region87: #{tpu_custom_call.1} parent=5 // pred_region
        // Predicated region
        $region89: #{tpu_custom_call.1} parent=87 // pred_check
          %p531 = pneg %p48
        $region90: #{tpu_custom_call.1} parent=87 // pred_check_branch
          %533 = sbr.rel (%p531) target = $region92
        $region91: #{tpu_custom_call.1} parent=87 // pred_region
          %p534 = scmp.lt.s32.totalorder %s28, 1
          %s535 = scalar_select %p534, %s28, 1
          %s536 = smul.addr %s535, 8
          %s537 = scalar_lea.vmem %s0, %s536
        $region92: #{tpu_custom_call.1} parent=87 // pred_fallthru
          _
      $region88: #{tpu_custom_call.1} parent=5 // pred_fallthru
        _
      %p538 = scmp.le.s32.totalorder 1, %s28
      %p539 = scmp.lt.s32.totalorder %s28, 3
      %p540 = pnand %p538, %p539
      %p541 = pneg %p540
      // Predicated region
      $region93: #{tpu_custom_call.1} parent=5 // pred_check
        _
      $region94: #{tpu_custom_call.1} parent=5 // pred_check_branch
        %543 = sbr.rel (%p540) target = $region96
      $region95: #{tpu_custom_call.1} parent=5 // pred_region
        %s544 = ssub.s32 %s28, 1
        %p545 = scmp.lt.s32.totalorder %s33, 1
        %s546 = scalar_select %p545, %s33, 1
        %s547 = smul.addr %s546, 8
        %s548 = scalar_lea.vmem %s0, %s547
        %p549 = pneg %p54
        %p550 = pneg %p51
        %p551 = pneg %p75
        %p552 = pneg %p72
        %p553 = pneg %p96
        %p554 = pneg %p93
        %p555 = pneg %p117
        %p556 = pneg %p114
        %p557 = pneg %p138
        %p558 = pneg %p135
        %p559 = pneg %p159
        %p560 = pneg %p156
        %p561 = pneg %p180
        %p562 = pneg %p177
        %p563 = pneg %p201
        %p564 = pneg %p198
        %p565 = pneg %p222
        %p566 = pneg %p219
        %p567 = pneg %p243
        %p568 = pneg %p240
        %p569 = pneg %p264
        %p570 = pneg %p261
        %p571 = pneg %p285
        %p572 = pneg %p282
        %p573 = pneg %p306
        %p574 = pneg %p303
        %p575 = pneg %p327
        %p576 = pneg %p324
        %p577 = pneg %p348
        %p578 = pneg %p345
        %p579 = pneg %p369
        %p580 = pneg %p366
        %p581 = pneg %p390
        %p582 = pneg %p387
        %p583 = pneg %p411
        %p584 = pneg %p408
        %p585 = pneg %p432
        %p586 = pneg %p429
        %p587 = pneg %p458
        %p588 = pneg %p455
        %s589 = sand.u32 %s445, 1
        %s590 = scalar_lea.sflag [#allocation3], %s589
        %s591 = sand.u32 %s445, 1
        %s592 = smul.addr %s591, 8
        %s593 = scalar_lea.vmem [#allocation2], %s592
        %p594 = scmp.lt.s32.totalorder %s33, 1
        %s595 = scalar_select %p594, %s33, 1
        %s596 = smul.addr %s595, 8
        %s597 = scalar_lea.vmem %s0, %s596
        %v599 = vld [vmem:[%s15] sm:$0xf]
        %v600 = vld [vmem:[%s15 + $0x4] sm:$0xf]
        %v601 = vld [vmem:[%s15 + $0x8] sm:$0xf]
        %v602 = vld [vmem:[%s15 + $0xc] sm:$0xf]
        %v603 = vld [vmem:[%s15 + $0x10] sm:$0xf]
        %v604 = vld [vmem:[%s15 + $0x14] sm:$0xf]
        %v605 = vld [vmem:[%s15 + $0x18] sm:$0xf]
        %v606 = vld [vmem:[%s15 + $0x1c] sm:$0xf]
        %v607 = vld [vmem:[%s15 + $0x20] sm:$0xf]
        %v608 = vld [vmem:[%s15 + $0x24] sm:$0xf]
        %v609 = vld [vmem:[%s15 + $0x28] sm:$0xf]
        %v610 = vld [vmem:[%s15 + $0x2c] sm:$0xf]
        %v611 = vld [vmem:[%s15 + $0x30] sm:$0xf]
        %v612 = vld [vmem:[%s15 + $0x34] sm:$0xf]
        %v613 = vld [vmem:[%s15 + $0x38] sm:$0xf]
        %v614 = vld [vmem:[%s15 + $0x3c] sm:$0xf]
        %v615 = vld [vmem:[%s16] sm:$0x3]
        %v616 = vld [vmem:[%s17] sm:$0xf]
        %v617 = vld [vmem:[%s17 + $0x4] sm:$0xf]
        %v618 = vld [vmem:[%s18] sm:$0xf]
        %v619 = vld [vmem:[%s18 + $0x4] sm:$0xf]
        %v620 = vld [vmem:[%s18 + $0x8] sm:$0xf]
        %v621 = vld [vmem:[%s18 + $0xc] sm:$0xf]
        %v622 = vld [vmem:[%s18 + $0x10] sm:$0xf]
        %v623 = vld [vmem:[%s18 + $0x14] sm:$0xf]
        %v624 = vld [vmem:[%s18 + $0x18] sm:$0xf]
        %v625 = vld [vmem:[%s18 + $0x1c] sm:$0xf]
        %v626 = vld [vmem:[%s18 + $0x20] sm:$0xf]
        %v627 = vld [vmem:[%s18 + $0x24] sm:$0xf]
        %v628 = vld [vmem:[%s18 + $0x28] sm:$0xf]
        %v629 = vld [vmem:[%s18 + $0x2c] sm:$0xf]
        %v630 = vld [vmem:[%s18 + $0x30] sm:$0xf]
        %v631 = vld [vmem:[%s18 + $0x34] sm:$0xf]
        %v632 = vld [vmem:[%s18 + $0x38] sm:$0xf]
        %v633 = vld [vmem:[%s18 + $0x3c] sm:$0xf]
        %v634 = vld [vmem:[%s597] sm:$0xff]
        %v635 = vpack.c.bf16 %v634, %v634
        %v636 = vld [vmem:[%s1] sm:$0xff]
        %v637 = vld [vmem:[%s1 + $0x8] sm:$0xf]
        %v638 = vld [vmem:[%s1 + $0xc] sm:$0xff]
        %v639 = vld [vmem:[%s1 + $0x14] sm:$0xf]
        %v640 = vld [vmem:[%s1 + $0x18] sm:$0xff]
        %v641 = vld [vmem:[%s1 + $0x20] sm:$0xf]
        %v642 = vld [vmem:[%s1 + $0x24] sm:$0xff]
        %v643 = vld [vmem:[%s1 + $0x2c] sm:$0xf]
        %v644 = vld [vmem:[%s2] sm:$0x7]
        %v646 = vlaneseq
        %v647 = vshrl.u32 %v646, 7
        %v648 = vsub.s32 0, %v647
        %v649 = vrot.slane %v644, %v648
        %v650 = vlaneseq
        %v651 = vshrl.u32 %v650, 7
        %v652 = vsub.s32 1, %v651
        %v653 = vrot.slane %v644, %v652
        %v654 = vlaneseq
        %v655 = vshrl.u32 %v654, 7
        %v656 = vsub.s32 2, %v655
        %v657 = vrot.slane %v644, %v656
        %v669 = vunpack.c.l.b16 %v636
        %v670 = vunpack.c.h.b16 %v636
        %v671 = vunpack.c.l.b16 %v637
        %v672 = vunpack.c.l.b16 %v638
        %v673 = vunpack.c.h.b16 %v638
        %v674 = vunpack.c.l.b16 %v639
        %v675 = vunpack.c.l.b16 %v640
        %v676 = vunpack.c.h.b16 %v640
        %v677 = vunpack.c.l.b16 %v641
        %v678 = vunpack.c.l.b16 %v642
        %v679 = vunpack.c.h.b16 %v642
        %v680 = vunpack.c.l.b16 %v643
        %v681 = vpack.c.b16 %v672, %v669
        %v682 = vpack.c.b16 %v673, %v670
        %v683 = vpack.c.b16 %v674, %v671
        %v684 = vpack.c.b16 %v678, %v675
        %v685 = vpack.c.b16 %v679, %v676
        %v686 = vpack.c.b16 %v680, %v677
        %vm693 = vcmask 261120
        %v695 = vsel %vm693, %v635, 0
        %697 = vmatprep.subr.bf16.mxu0 0
        %698 = vmatpush1.bf16.msra.mxu0 0
        %699 = vmatprep.subr.bf16.mxu0 0
        %700 = vmatpush1.bf16.msra.mxu0 0
        %701 = vmatprep.subr.bf16.mxu0 0
        %702 = vmatpush1.bf16.msra.mxu0 0
        %703 = vmatprep.subr.bf16.mxu0 0
        %704 = vmatpush1.bf16.msra.mxu0 0
        %705 = vmatprep.subr.bf16.mxu0 0
        %706 = vmatpush1.bf16.msra.mxu0 0
        %707 = vmatprep.subr.bf16.mxu0 0
        %708 = vmatpush1.bf16.msra.mxu0 0
        %709 = vmatprep.subr.bf16.mxu0 %v685
        %710 = vmatpush1.bf16.msra.mxu0 %v684
        %711 = vmatprep.subr.bf16.mxu0 %v682
        %712 = vmatpush1.bf16.msra.mxu0 %v681
        %713 = vmatprep.subr.bf16.mxu0 0
        %714 = vmatpush2.bf16.msra.mxu0 0
        %715 = vmatprep.subr.bf16.mxu0 0
        %716 = vmatpush2.bf16.msra.mxu0 0
        %717 = vmatprep.subr.bf16.mxu0 0
        %718 = vmatpush2.bf16.msra.mxu0 0
        %719 = vmatprep.subr.bf16.mxu0 0
        %720 = vmatpush2.bf16.msra.mxu0 0
        %721 = vmatprep.subr.bf16.mxu0 0
        %722 = vmatpush2.bf16.msra.mxu0 0
        %723 = vmatprep.subr.bf16.mxu0 0
        %724 = vmatpush2.bf16.msra.mxu0 0
        %725 = vmatprep.subr.bf16.mxu0 0
        %726 = vmatpush2.bf16.msra.mxu0 0
        %727 = vmatprep.subr.bf16.mxu0 0
        %728 = vmatpush2.bf16.msra.mxu0 0
        %729 = vmatprep.mubr.bf16.mxu0 0
        %730 = vmatmul.mubr.bf16.gmra.mxu0 %v695
        %v731 = vpop.f32.mrf.mxu0
        %v732 = vadd.f32 %v649, %v731
        %v733 = vpop.f32.mrf.mxu0
        %v734 = vadd.f32 %v653, %v733
        %v735 = vpop.f32.mrf.mxu0
        %v736 = vpop.f32.mrf.mxu0
        %737 = vdwg.mxu0
        %738 = vmatprep.subr.bf16.mxu0 0
        %739 = vmatpush1.bf16.msra.mxu0 0
        %740 = vmatprep.subr.bf16.mxu0 0
        %741 = vmatpush1.bf16.msra.mxu0 0
        %742 = vmatprep.subr.bf16.mxu0 0
        %743 = vmatpush1.bf16.msra.mxu0 0
        %744 = vmatprep.subr.bf16.mxu0 0
        %745 = vmatpush1.bf16.msra.mxu0 0
        %746 = vmatprep.subr.bf16.mxu0 0
        %747 = vmatpush1.bf16.msra.mxu0 0
        %748 = vmatprep.subr.bf16.mxu0 0
        %749 = vmatpush1.bf16.msra.mxu0 0
        %750 = vmatprep.subr.bf16.mxu0 0
        %751 = vmatpush1.bf16.msra.mxu0 %v686
        %752 = vmatprep.subr.bf16.mxu0 0
        %753 = vmatpush1.bf16.msra.mxu0 %v683
        %754 = vmatprep.subr.bf16.mxu0 0
        %755 = vmatpush2.bf16.msra.mxu0 0
        %756 = vmatprep.subr.bf16.mxu0 0
        %757 = vmatpush2.bf16.msra.mxu0 0
        %758 = vmatprep.subr.bf16.mxu0 0
        %759 = vmatpush2.bf16.msra.mxu0 0
        %760 = vmatprep.subr.bf16.mxu0 0
        %761 = vmatpush2.bf16.msra.mxu0 0
        %762 = vmatprep.subr.bf16.mxu0 0
        %763 = vmatpush2.bf16.msra.mxu0 0
        %764 = vmatprep.subr.bf16.mxu0 0
        %765 = vmatpush2.bf16.msra.mxu0 0
        %766 = vmatprep.subr.bf16.mxu0 0
        %767 = vmatpush2.bf16.msra.mxu0 0
        %768 = vmatprep.subr.bf16.mxu0 0
        %769 = vmatpush2.bf16.msra.mxu0 0
        %770 = vmatprep.mubr.bf16.mxu0 0
        %771 = vmatmul.mubr.bf16.gmra.mxu0 %v695
        %v772 = vpop.f32.mrf.mxu0
        %v773 = vadd.f32 %v657, %v772
        %v774 = vpop.f32.mrf.mxu0
        %v775 = vpop.f32.mrf.mxu0
        %v776 = vpop.f32.mrf.mxu0
        %777 = vdwg.mxu0
        %v778 = vmul.f32 %v732, %v734
        %v779 = vpack.c.bf16 %v778, %v778
        %v796 = vunpack.c.l.b16 %v599
        %v797 = vunpack.c.l.b16 %v600
        %v798 = vunpack.c.l.b16 %v601
        %v799 = vunpack.c.l.b16 %v602
        %v800 = vunpack.c.l.b16 %v603
        %v801 = vunpack.c.l.b16 %v604
        %v802 = vunpack.c.l.b16 %v605
        %v803 = vunpack.c.l.b16 %v606
        %v804 = vunpack.c.l.b16 %v607
        %v805 = vunpack.c.l.b16 %v608
        %v806 = vunpack.c.l.b16 %v609
        %v807 = vunpack.c.l.b16 %v610
        %v808 = vunpack.c.l.b16 %v611
        %v809 = vunpack.c.l.b16 %v612
        %v810 = vunpack.c.l.b16 %v613
        %v811 = vunpack.c.l.b16 %v614
        %v812 = vpack.c.b16 %v797, %v796
        %v813 = vpack.c.b16 %v799, %v798
        %v814 = vpack.c.b16 %v801, %v800
        %v815 = vpack.c.b16 %v803, %v802
        %v816 = vpack.c.b16 %v805, %v804
        %v817 = vpack.c.b16 %v807, %v806
        %v818 = vpack.c.b16 %v809, %v808
        %v819 = vpack.c.b16 %v811, %v810
        %828 = vmatprep.subr.bf16.mxu0 0
        %829 = vmatpush1.bf16.msra.mxu0 %v819
        %830 = vmatprep.subr.bf16.mxu0 0
        %831 = vmatpush1.bf16.msra.mxu0 %v818
        %832 = vmatprep.subr.bf16.mxu0 0
        %833 = vmatpush1.bf16.msra.mxu0 %v817
        %834 = vmatprep.subr.bf16.mxu0 0
        %835 = vmatpush1.bf16.msra.mxu0 %v816
        %836 = vmatprep.subr.bf16.mxu0 0
        %837 = vmatpush1.bf16.msra.mxu0 %v815
        %838 = vmatprep.subr.bf16.mxu0 0
        %839 = vmatpush1.bf16.msra.mxu0 %v814
        %840 = vmatprep.subr.bf16.mxu0 0
        %841 = vmatpush1.bf16.msra.mxu0 %v813
        %842 = vmatprep.subr.bf16.mxu0 0
        %843 = vmatpush1.bf16.msra.mxu0 %v812
        %844 = vmatprep.subr.bf16.mxu0 0
        %845 = vmatpush2.bf16.msra.mxu0 0
        %846 = vmatprep.subr.bf16.mxu0 0
        %847 = vmatpush2.bf16.msra.mxu0 0
        %848 = vmatprep.subr.bf16.mxu0 0
        %849 = vmatpush2.bf16.msra.mxu0 0
        %850 = vmatprep.subr.bf16.mxu0 0
        %851 = vmatpush2.bf16.msra.mxu0 0
        %852 = vmatprep.subr.bf16.mxu0 0
        %853 = vmatpush2.bf16.msra.mxu0 0
        %854 = vmatprep.subr.bf16.mxu0 0
        %855 = vmatpush2.bf16.msra.mxu0 0
        %856 = vmatprep.subr.bf16.mxu0 0
        %857 = vmatpush2.bf16.msra.mxu0 0
        %858 = vmatprep.subr.bf16.mxu0 0
        %859 = vmatpush2.bf16.msra.mxu0 0
        %860 = vmatprep.mubr.bf16.mxu0 0
        %861 = vmatmul.mubr.bf16.gmra.mxu0 %v779
        %v862 = vpop.f32.mrf.mxu0
        %v863 = vadd.f32 0.0, %v862
        %v864 = vpop.f32.mrf.mxu0
        %v865 = vpop.f32.mrf.mxu0
        %v866 = vpop.f32.mrf.mxu0
        %867 = vdwg.mxu0
        %869 = vrot.lane.b32.xlu0 %v863, 124
        %v870 = vpop.permute.xlu0 %869
        %v872 = vmax.f32 %v863, %v870
        %873 = vrot.lane.b32.xlu0 %v863, 120
        %v874 = vpop.permute.xlu0 %873
        %v876 = vmax.f32 %v872, %v874
        %877 = vrot.lane.b32.xlu0 %v863, 116
        %v878 = vpop.permute.xlu0 %877
        %v880 = vmax.f32 %v876, %v878
        %v881 = vpack.c.bf16 %v880, %v880
        %vm882 = vcmask 31744
        %v884 = vsel %vm882, %v881, 0
        %vm886 = vcmask 1041408
        %v888 = vsel %vm886, %v615, 0
        %890 = vmatprep.subr.bf16.mxu0 0
        %891 = vmatpush1.bf16.msra.mxu0 0
        %892 = vmatprep.subr.bf16.mxu0 0
        %893 = vmatpush1.bf16.msra.mxu0 0
        %894 = vmatprep.subr.bf16.mxu0 0
        %895 = vmatpush1.bf16.msra.mxu0 0
        %896 = vmatprep.subr.bf16.mxu0 0
        %897 = vmatpush1.bf16.msra.mxu0 0
        %898 = vmatprep.subr.bf16.mxu0 0
        %899 = vmatpush1.bf16.msra.mxu0 0
        %900 = vmatprep.subr.bf16.mxu0 0
        %901 = vmatpush1.bf16.msra.mxu0 0
        %902 = vmatprep.subr.bf16.mxu0 0
        %903 = vmatpush1.bf16.msra.mxu0 0
        %904 = vmatprep.subr.bf16.mxu0 0
        %905 = vmatpush1.bf16.msra.mxu0 %v888
        %906 = vmatprep.subr.bf16.mxu0 0
        %907 = vmatpush2.bf16.msra.mxu0 0
        %908 = vmatprep.subr.bf16.mxu0 0
        %909 = vmatpush2.bf16.msra.mxu0 0
        %910 = vmatprep.subr.bf16.mxu0 0
        %911 = vmatpush2.bf16.msra.mxu0 0
        %912 = vmatprep.subr.bf16.mxu0 0
        %913 = vmatpush2.bf16.msra.mxu0 0
        %914 = vmatprep.subr.bf16.mxu0 0
        %915 = vmatpush2.bf16.msra.mxu0 0
        %916 = vmatprep.subr.bf16.mxu0 0
        %917 = vmatpush2.bf16.msra.mxu0 0
        %918 = vmatprep.subr.bf16.mxu0 0
        %919 = vmatpush2.bf16.msra.mxu0 0
        %920 = vmatprep.subr.bf16.mxu0 0
        %921 = vmatpush2.bf16.msra.mxu0 0
        %922 = vmatprep.mubr.bf16.mxu0 0
        %923 = vmatmul.mubr.bf16.gmra.mxu0 %v884
        %v924 = vpop.f32.mrf.mxu0
        %v925 = vadd.f32 0.0, %v924
        %v926 = vpop.f32.mrf.mxu0
        %v927 = vpop.f32.mrf.mxu0
        %v928 = vpop.f32.mrf.mxu0
        %929 = vdwg.mxu0
        %v930 = vsub.f32 %v863, %v925
        %v931 = vmul.f32 %v930, 1.442695
        %v932 = vpow.pop %v931
        %934 = vrot.lane.b32.xlu0 %v932, 124
        %v935 = vpop.permute.xlu0 %934
        %v937 = vadd.f32 %v932, %v935
        %938 = vrot.lane.b32.xlu0 %v932, 120
        %v939 = vpop.permute.xlu0 %938
        %v941 = vadd.f32 %v937, %v939
        %942 = vrot.lane.b32.xlu0 %v932, 116
        %v943 = vpop.permute.xlu0 %942
        %v945 = vadd.f32 %v941, %v943
        %v946 = vrcp.pop %v945
        %v947 = vpack.c.bf16 %v946, %v946
        %v949 = vsel %vm882, %v947, 0
        %951 = vmatprep.subr.bf16.mxu0 0
        %952 = vmatpush1.bf16.msra.mxu0 0
        %953 = vmatprep.subr.bf16.mxu0 0
        %954 = vmatpush1.bf16.msra.mxu0 0
        %955 = vmatprep.subr.bf16.mxu0 0
        %956 = vmatpush1.bf16.msra.mxu0 0
        %957 = vmatprep.subr.bf16.mxu0 0
        %958 = vmatpush1.bf16.msra.mxu0 0
        %959 = vmatprep.subr.bf16.mxu0 0
        %960 = vmatpush1.bf16.msra.mxu0 0
        %961 = vmatprep.subr.bf16.mxu0 0
        %962 = vmatpush1.bf16.msra.mxu0 0
        %963 = vmatprep.subr.bf16.mxu0 0
        %964 = vmatpush1.bf16.msra.mxu0 0
        %965 = vmatprep.subr.bf16.mxu0 0
        %966 = vmatpush1.bf16.msra.mxu0 %v888
        %967 = vmatprep.subr.bf16.mxu0 0
        %968 = vmatpush2.bf16.msra.mxu0 0
        %969 = vmatprep.subr.bf16.mxu0 0
        %970 = vmatpush2.bf16.msra.mxu0 0
        %971 = vmatprep.subr.bf16.mxu0 0
        %972 = vmatpush2.bf16.msra.mxu0 0
        %973 = vmatprep.subr.bf16.mxu0 0
        %974 = vmatpush2.bf16.msra.mxu0 0
        %975 = vmatprep.subr.bf16.mxu0 0
        %976 = vmatpush2.bf16.msra.mxu0 0
        %977 = vmatprep.subr.bf16.mxu0 0
        %978 = vmatpush2.bf16.msra.mxu0 0
        %979 = vmatprep.subr.bf16.mxu0 0
        %980 = vmatpush2.bf16.msra.mxu0 0
        %981 = vmatprep.subr.bf16.mxu0 0
        %982 = vmatpush2.bf16.msra.mxu0 0
        %983 = vmatprep.mubr.bf16.mxu0 0
        %984 = vmatmul.mubr.bf16.gmra.mxu0 %v949
        %v985 = vpop.f32.mrf.mxu0
        %v986 = vadd.f32 0.0, %v985
        %v987 = vpop.f32.mrf.mxu0
        %v988 = vpop.f32.mrf.mxu0
        %v989 = vpop.f32.mrf.mxu0
        %990 = vdwg.mxu0
        %v991 = vmul.f32 %v932, %v986
        %v992 = vpack.c.bf16 %v991, %v991
        %v995 = vunpack.c.l.b16 %v616
        %v996 = vunpack.c.l.b16 %v617
        %v997 = vpack.c.b16 %v996, %v995
        %vm999 = vcmask 130048
        %v1001 = vsel %vm999, %v992, 0
        %1003 = vmatprep.subr.bf16.mxu0 0
        %1004 = vmatpush1.bf16.msra.mxu0 0
        %1005 = vmatprep.subr.bf16.mxu0 0
        %1006 = vmatpush1.bf16.msra.mxu0 0
        %1007 = vmatprep.subr.bf16.mxu0 0
        %1008 = vmatpush1.bf16.msra.mxu0 0
        %1009 = vmatprep.subr.bf16.mxu0 0
        %1010 = vmatpush1.bf16.msra.mxu0 0
        %1011 = vmatprep.subr.bf16.mxu0 0
        %1012 = vmatpush1.bf16.msra.mxu0 0
        %1013 = vmatprep.subr.bf16.mxu0 0
        %1014 = vmatpush1.bf16.msra.mxu0 0
        %1015 = vmatprep.subr.bf16.mxu0 0
        %1016 = vmatpush1.bf16.msra.mxu0 0
        %1017 = vmatprep.subr.bf16.mxu0 0
        %1018 = vmatpush1.bf16.msra.mxu0 %v997
        %1019 = vmatprep.subr.bf16.mxu0 0
        %1020 = vmatpush2.bf16.msra.mxu0 0
        %1021 = vmatprep.subr.bf16.mxu0 0
        %1022 = vmatpush2.bf16.msra.mxu0 0
        %1023 = vmatprep.subr.bf16.mxu0 0
        %1024 = vmatpush2.bf16.msra.mxu0 0
        %1025 = vmatprep.subr.bf16.mxu0 0
        %1026 = vmatpush2.bf16.msra.mxu0 0
        %1027 = vmatprep.subr.bf16.mxu0 0
        %1028 = vmatpush2.bf16.msra.mxu0 0
        %1029 = vmatprep.subr.bf16.mxu0 0
        %1030 = vmatpush2.bf16.msra.mxu0 0
        %1031 = vmatprep.subr.bf16.mxu0 0
        %1032 = vmatpush2.bf16.msra.mxu0 0
        %1033 = vmatprep.subr.bf16.mxu0 0
        %1034 = vmatpush2.bf16.msra.mxu0 0
        %1035 = vmatprep.mubr.bf16.mxu0 0
        %1036 = vmatmul.mubr.bf16.gmra.mxu0 %v1001
        %v1037 = vpop.f32.mrf.mxu0
        %v1038 = vadd.f32 0.0, %v1037
        %v1039 = vpop.f32.mrf.mxu0
        %v1040 = vpop.f32.mrf.mxu0
        %v1041 = vpop.f32.mrf.mxu0
        %1042 = vdwg.mxu0
        %v1043 = vmul.f32 %v1038, %v773
        %v1044 = vpack.c.bf16 %v1043, %v1043
        %v1061 = vunpack.c.l.b16 %v618
        %v1062 = vunpack.c.l.b16 %v619
        %v1063 = vunpack.c.l.b16 %v620
        %v1064 = vunpack.c.l.b16 %v621
        %v1065 = vunpack.c.l.b16 %v622
        %v1066 = vunpack.c.l.b16 %v623
        %v1067 = vunpack.c.l.b16 %v624
        %v1068 = vunpack.c.l.b16 %v625
        %v1069 = vunpack.c.l.b16 %v626
        %v1070 = vunpack.c.l.b16 %v627
        %v1071 = vunpack.c.l.b16 %v628
        %v1072 = vunpack.c.l.b16 %v629
        %v1073 = vunpack.c.l.b16 %v630
        %v1074 = vunpack.c.l.b16 %v631
        %v1075 = vunpack.c.l.b16 %v632
        %v1076 = vunpack.c.l.b16 %v633
        %v1077 = vpack.c.b16 %v1062, %v1061
        %v1078 = vpack.c.b16 %v1064, %v1063
        %v1079 = vpack.c.b16 %v1066, %v1065
        %v1080 = vpack.c.b16 %v1068, %v1067
        %v1081 = vpack.c.b16 %v1070, %v1069
        %v1082 = vpack.c.b16 %v1072, %v1071
        %v1083 = vpack.c.b16 %v1074, %v1073
        %v1084 = vpack.c.b16 %v1076, %v1075
        %1093 = vmatprep.subr.bf16.mxu0 0
        %1094 = vmatpush1.bf16.msra.mxu0 %v1084
        %1095 = vmatprep.subr.bf16.mxu0 0
        %1096 = vmatpush1.bf16.msra.mxu0 %v1083
        %1097 = vmatprep.subr.bf16.mxu0 0
        %1098 = vmatpush1.bf16.msra.mxu0 %v1082
        %1099 = vmatprep.subr.bf16.mxu0 0
        %1100 = vmatpush1.bf16.msra.mxu0 %v1081
        %1101 = vmatprep.subr.bf16.mxu0 0
        %1102 = vmatpush1.bf16.msra.mxu0 %v1080
        %1103 = vmatprep.subr.bf16.mxu0 0
        %1104 = vmatpush1.bf16.msra.mxu0 %v1079
        %1105 = vmatprep.subr.bf16.mxu0 0
        %1106 = vmatpush1.bf16.msra.mxu0 %v1078
        %1107 = vmatprep.subr.bf16.mxu0 0
        %1108 = vmatpush1.bf16.msra.mxu0 %v1077
        %1109 = vmatprep.subr.bf16.mxu0 0
        %1110 = vmatpush2.bf16.msra.mxu0 0
        %1111 = vmatprep.subr.bf16.mxu0 0
        %1112 = vmatpush2.bf16.msra.mxu0 0
        %1113 = vmatprep.subr.bf16.mxu0 0
        %1114 = vmatpush2.bf16.msra.mxu0 0
        %1115 = vmatprep.subr.bf16.mxu0 0
        %1116 = vmatpush2.bf16.msra.mxu0 0
        %1117 = vmatprep.subr.bf16.mxu0 0
        %1118 = vmatpush2.bf16.msra.mxu0 0
        %1119 = vmatprep.subr.bf16.mxu0 0
        %1120 = vmatpush2.bf16.msra.mxu0 0
        %1121 = vmatprep.subr.bf16.mxu0 0
        %1122 = vmatpush2.bf16.msra.mxu0 0
        %1123 = vmatprep.subr.bf16.mxu0 0
        %1124 = vmatpush2.bf16.msra.mxu0 0
        %1125 = vmatprep.mubr.bf16.mxu0 0
        %1126 = vmatmul.mubr.bf16.gmra.mxu0 %v1044
        %v1127 = vpop.f32.mrf.mxu0
        %v1128 = vadd.f32 0.0, %v1127
        %v1129 = vpop.f32.mrf.mxu0
        %v1130 = vpop.f32.mrf.mxu0
        %v1131 = vpop.f32.mrf.mxu0
        %1132 = vdwg.mxu0
        %v1133 = vpack.c.bf16 %v1128, %v1128
        %v1134 = vld [vmem:[%s3] sm:$0xf]
        %v1135 = vld [vmem:[%s3 + $0x4] sm:$0xf]
        %v1136 = vld [vmem:[%s3 + $0x8] sm:$0xf]
        %v1137 = vld [vmem:[%s3 + $0xc] sm:$0xf]
        %v1138 = vld [vmem:[%s4] sm:$0x1]
        %v1140 = vlaneseq
        %v1141 = vshrl.u32 %v1140, 7
        %v1142 = vsub.s32 0, %v1141
        %v1143 = vrot.slane %v1138, %v1142
        %v1149 = vunpack.c.l.b16 %v1134
        %v1150 = vunpack.c.l.b16 %v1135
        %v1151 = vunpack.c.l.b16 %v1136
        %v1152 = vunpack.c.l.b16 %v1137
        %v1153 = vpack.c.b16 %v1150, %v1149
        %v1154 = vpack.c.b16 %v1152, %v1151
        %v1158 = vsel %vm693, %v1133, 0
        %1160 = vmatprep.subr.bf16.mxu0 0
        %1161 = vmatpush1.bf16.msra.mxu0 0
        %1162 = vmatprep.subr.bf16.mxu0 0
        %1163 = vmatpush1.bf16.msra.mxu0 0
        %1164 = vmatprep.subr.bf16.mxu0 0
        %1165 = vmatpush1.bf16.msra.mxu0 0
        %1166 = vmatprep.subr.bf16.mxu0 0
        %1167 = vmatpush1.bf16.msra.mxu0 0
        %1168 = vmatprep.subr.bf16.mxu0 0
        %1169 = vmatpush1.bf16.msra.mxu0 0
        %1170 = vmatprep.subr.bf16.mxu0 0
        %1171 = vmatpush1.bf16.msra.mxu0 0
        %1172 = vmatprep.subr.bf16.mxu0 0
        %1173 = vmatpush1.bf16.msra.mxu0 %v1154
        %1174 = vmatprep.subr.bf16.mxu0 0
        %1175 = vmatpush1.bf16.msra.mxu0 %v1153
        %1176 = vmatprep.subr.bf16.mxu0 0
        %1177 = vmatpush2.bf16.msra.mxu0 0
        %1178 = vmatprep.subr.bf16.mxu0 0
        %1179 = vmatpush2.bf16.msra.mxu0 0
        %1180 = vmatprep.subr.bf16.mxu0 0
        %1181 = vmatpush2.bf16.msra.mxu0 0
        %1182 = vmatprep.subr.bf16.mxu0 0
        %1183 = vmatpush2.bf16.msra.mxu0 0
        %1184 = vmatprep.subr.bf16.mxu0 0
        %1185 = vmatpush2.bf16.msra.mxu0 0
        %1186 = vmatprep.subr.bf16.mxu0 0
        %1187 = vmatpush2.bf16.msra.mxu0 0
        %1188 = vmatprep.subr.bf16.mxu0 0
        %1189 = vmatpush2.bf16.msra.mxu0 0
        %1190 = vmatprep.subr.bf16.mxu0 0
        %1191 = vmatpush2.bf16.msra.mxu0 0
        %1192 = vmatprep.mubr.bf16.mxu0 0
        %1193 = vmatmul.mubr.bf16.gmra.mxu0 %v1158
        %v1194 = vpop.f32.mrf.mxu0
        %v1195 = vadd.f32 %v1143, %v1194
        %v1196 = vpop.f32.mrf.mxu0
        %v1197 = vpop.f32.mrf.mxu0
        %v1198 = vpop.f32.mrf.mxu0
        %1199 = vdwg.mxu0
        %v1200 = vld [vmem:[%s5] sm:$0x1]
        %v1201 = vld [vmem:[%s6] sm:$0x1]
        %v1202 = vsel %vm693, %v1195, 0.0
        %1203 = vadd.xlane.f32.xlu0 %v1202
        %v1204 = vpop.xlane.xlu0 %1203
        %v1205 = vrcp.pop 32.0
        %v1206 = vmul.f32 %v1204, %v1205
        %v1207 = vsub.f32 %v1195, %v1206
        %v1208 = vmul.f32 %v1207, %v1207
        %v1209 = vsel %vm693, %v1208, 0.0
        %1210 = vadd.xlane.f32.xlu0 %v1209
        %v1211 = vpop.xlane.xlu0 %1210
        %v1212 = vmul.f32 %v1211, %v1205
        %v1213 = vadd.f32 %v1212, 1e-05
        %v1214 = vrsqrt.pop %v1213
        %v1215 = vmul.f32 %v1207, %v1214
        %v1217 = vlaneseq
        %v1218 = vshrl.u32 %v1217, 7
        %v1219 = vsub.s32 0, %v1218
        %v1220 = vrot.slane %v1200, %v1219
        %v1222 = vmul.f32 %v1215, %v1220
        %v1224 = vlaneseq
        %v1225 = vshrl.u32 %v1224, 7
        %v1226 = vsub.s32 0, %v1225
        %v1227 = vrot.slane %v1201, %v1226
        %v1229 = vadd.f32 %v1222, %v1227
        %v1230 = vadd.f32 %v634, %v1229
        %v1231 = vpack.c.bf16 %v1230, %v1230
        %v1232 = vld [vmem:[%s7] sm:$0xf]
        %v1233 = vld [vmem:[%s7 + $0x4] sm:$0xf]
        %v1234 = vld [vmem:[%s7 + $0x8] sm:$0xf]
        %v1235 = vld [vmem:[%s7 + $0xc] sm:$0xf]
        %v1236 = vld [vmem:[%s8] sm:$0x1]
        %v1238 = vlaneseq
        %v1239 = vshrl.u32 %v1238, 7
        %v1240 = vsub.s32 0, %v1239
        %v1241 = vrot.slane %v1236, %v1240
        %v1247 = vunpack.c.l.b16 %v1232
        %v1248 = vunpack.c.l.b16 %v1233
        %v1249 = vunpack.c.l.b16 %v1234
        %v1250 = vunpack.c.l.b16 %v1235
        %v1251 = vpack.c.b16 %v1248, %v1247
        %v1252 = vpack.c.b16 %v1250, %v1249
        %v1256 = vsel %vm693, %v1231, 0
        %1258 = vmatprep.subr.bf16.mxu0 0
        %1259 = vmatpush1.bf16.msra.mxu0 0
        %1260 = vmatprep.subr.bf16.mxu0 0
        %1261 = vmatpush1.bf16.msra.mxu0 0
        %1262 = vmatprep.subr.bf16.mxu0 0
        %1263 = vmatpush1.bf16.msra.mxu0 0
        %1264 = vmatprep.subr.bf16.mxu0 0
        %1265 = vmatpush1.bf16.msra.mxu0 0
        %1266 = vmatprep.subr.bf16.mxu0 0
        %1267 = vmatpush1.bf16.msra.mxu0 0
        %1268 = vmatprep.subr.bf16.mxu0 0
        %1269 = vmatpush1.bf16.msra.mxu0 0
        %1270 = vmatprep.subr.bf16.mxu0 0
        %1271 = vmatpush1.bf16.msra.mxu0 %v1252
        %1272 = vmatprep.subr.bf16.mxu0 0
        %1273 = vmatpush1.bf16.msra.mxu0 %v1251
        %1274 = vmatprep.subr.bf16.mxu0 0
        %1275 = vmatpush2.bf16.msra.mxu0 0
        %1276 = vmatprep.subr.bf16.mxu0 0
        %1277 = vmatpush2.bf16.msra.mxu0 0
        %1278 = vmatprep.subr.bf16.mxu0 0
        %1279 = vmatpush2.bf16.msra.mxu0 0
        %1280 = vmatprep.subr.bf16.mxu0 0
        %1281 = vmatpush2.bf16.msra.mxu0 0
        %1282 = vmatprep.subr.bf16.mxu0 0
        %1283 = vmatpush2.bf16.msra.mxu0 0
        %1284 = vmatprep.subr.bf16.mxu0 0
        %1285 = vmatpush2.bf16.msra.mxu0 0
        %1286 = vmatprep.subr.bf16.mxu0 0
        %1287 = vmatpush2.bf16.msra.mxu0 0
        %1288 = vmatprep.subr.bf16.mxu0 0
        %1289 = vmatpush2.bf16.msra.mxu0 0
        %1290 = vmatprep.mubr.bf16.mxu0 0
        %1291 = vmatmul.mubr.bf16.gmra.mxu0 %v1256
        %v1292 = vpop.f32.mrf.mxu0
        %v1293 = vadd.f32 %v1241, %v1292
        %v1294 = vpop.f32.mrf.mxu0
        %v1295 = vpop.f32.mrf.mxu0
        %v1296 = vpop.f32.mrf.mxu0
        %1297 = vdwg.mxu0
        %v1298 = vmax.f32 %v1293, 0.0
        %v1299 = vpack.c.bf16 %v1298, %v1298
        %v1300 = vld [vmem:[%s9] sm:$0xf]
        %v1301 = vld [vmem:[%s9 + $0x4] sm:$0xf]
        %v1302 = vld [vmem:[%s9 + $0x8] sm:$0xf]
        %v1303 = vld [vmem:[%s9 + $0xc] sm:$0xf]
        %v1304 = vld [vmem:[%s9 + $0x10] sm:$0xf]
        %v1305 = vld [vmem:[%s9 + $0x14] sm:$0xf]
        %v1306 = vld [vmem:[%s9 + $0x18] sm:$0xf]
        %v1307 = vld [vmem:[%s9 + $0x1c] sm:$0xf]
        %v1308 = vld [vmem:[%s10] sm:$0x1]
        %v1310 = vlaneseq
        %v1311 = vshrl.u32 %v1310, 7
        %v1312 = vsub.s32 0, %v1311
        %v1313 = vrot.slane %v1308, %v1312
        %v1323 = vunpack.c.l.b16 %v1300
        %v1324 = vunpack.c.l.b16 %v1301
        %v1325 = vunpack.c.l.b16 %v1302
        %v1326 = vunpack.c.l.b16 %v1303
        %v1327 = vunpack.c.l.b16 %v1304
        %v1328 = vunpack.c.l.b16 %v1305
        %v1329 = vunpack.c.l.b16 %v1306
        %v1330 = vunpack.c.l.b16 %v1307
        %v1331 = vpack.c.b16 %v1324, %v1323
        %v1332 = vpack.c.b16 %v1326, %v1325
        %v1333 = vpack.c.b16 %v1328, %v1327
        %v1334 = vpack.c.b16 %v1330, %v1329
        %vm1339 = vcmask 523264
        %v1341 = vsel %vm1339, %v1299, 0
        %1343 = vmatprep.subr.bf16.mxu0 0
        %1344 = vmatpush1.bf16.msra.mxu0 0
        %1345 = vmatprep.subr.bf16.mxu0 0
        %1346 = vmatpush1.bf16.msra.mxu0 0
        %1347 = vmatprep.subr.bf16.mxu0 0
        %1348 = vmatpush1.bf16.msra.mxu0 0
        %1349 = vmatprep.subr.bf16.mxu0 0
        %1350 = vmatpush1.bf16.msra.mxu0 0
        %1351 = vmatprep.subr.bf16.mxu0 0
        %1352 = vmatpush1.bf16.msra.mxu0 %v1334
        %1353 = vmatprep.subr.bf16.mxu0 0
        %1354 = vmatpush1.bf16.msra.mxu0 %v1333
        %1355 = vmatprep.subr.bf16.mxu0 0
        %1356 = vmatpush1.bf16.msra.mxu0 %v1332
        %1357 = vmatprep.subr.bf16.mxu0 0
        %1358 = vmatpush1.bf16.msra.mxu0 %v1331
        %1359 = vmatprep.subr.bf16.mxu0 0
        %1360 = vmatpush2.bf16.msra.mxu0 0
        %1361 = vmatprep.subr.bf16.mxu0 0
        %1362 = vmatpush2.bf16.msra.mxu0 0
        %1363 = vmatprep.subr.bf16.mxu0 0
        %1364 = vmatpush2.bf16.msra.mxu0 0
        %1365 = vmatprep.subr.bf16.mxu0 0
        %1366 = vmatpush2.bf16.msra.mxu0 0
        %1367 = vmatprep.subr.bf16.mxu0 0
        %1368 = vmatpush2.bf16.msra.mxu0 0
        %1369 = vmatprep.subr.bf16.mxu0 0
        %1370 = vmatpush2.bf16.msra.mxu0 0
        %1371 = vmatprep.subr.bf16.mxu0 0
        %1372 = vmatpush2.bf16.msra.mxu0 0
        %1373 = vmatprep.subr.bf16.mxu0 0
        %1374 = vmatpush2.bf16.msra.mxu0 0
        %1375 = vmatprep.mubr.bf16.mxu0 0
        %1376 = vmatmul.mubr.bf16.gmra.mxu0 %v1341
        %v1377 = vpop.f32.mrf.mxu0
        %v1378 = vadd.f32 %v1313, %v1377
        %v1379 = vpop.f32.mrf.mxu0
        %v1380 = vpop.f32.mrf.mxu0
        %v1381 = vpop.f32.mrf.mxu0
        %1382 = vdwg.mxu0
        %v1383 = vld [vmem:[%s11] sm:$0x1]
        %v1384 = vld [vmem:[%s12] sm:$0x1]
        %v1385 = vsel %vm693, %v1378, 0.0
        %1386 = vadd.xlane.f32.xlu0 %v1385
        %v1387 = vpop.xlane.xlu0 %1386
        %v1388 = vmul.f32 %v1387, %v1205
        %v1389 = vsub.f32 %v1378, %v1388
        %v1390 = vmul.f32 %v1389, %v1389
        %v1391 = vsel %vm693, %v1390, 0.0
        %1392 = vadd.xlane.f32.xlu0 %v1391
        %v1393 = vpop.xlane.xlu0 %1392
        %v1394 = vmul.f32 %v1393, %v1205
        %v1395 = vadd.f32 %v1394, 1e-05
        %v1396 = vrsqrt.pop %v1395
        %v1397 = vmul.f32 %v1389, %v1396
        %v1399 = vlaneseq
        %v1400 = vshrl.u32 %v1399, 7
        %v1401 = vsub.s32 0, %v1400
        %v1402 = vrot.slane %v1383, %v1401
        %v1404 = vmul.f32 %v1397, %v1402
        %v1406 = vlaneseq
        %v1407 = vshrl.u32 %v1406, 7
        %v1408 = vsub.s32 0, %v1407
        %v1409 = vrot.slane %v1384, %v1408
        %v1411 = vadd.f32 %v1404, %v1409
        %v1412 = vadd.f32 %v634, %v1411
        %v1413 = vpack.c.bf16 %v1412, %v1412
        %s1414 = scalar_lea.vmem %s1, 48
        %v1415 = vld [vmem:[%s1414] sm:$0xff]
        %v1416 = vld [vmem:[%s1414 + $0x8] sm:$0xf]
        %v1417 = vld [vmem:[%s1414 + $0xc] sm:$0xff]
        %v1418 = vld [vmem:[%s1414 + $0x14] sm:$0xf]
        %v1419 = vld [vmem:[%s1414 + $0x18] sm:$0xff]
        %v1420 = vld [vmem:[%s1414 + $0x20] sm:$0xf]
        %v1421 = vld [vmem:[%s1414 + $0x24] sm:$0xff]
        %v1422 = vld [vmem:[%s1414 + $0x2c] sm:$0xf]
        %s1423 = scalar_lea.vmem %s2, 3
        %v1424 = vld [vmem:[%s1423] sm:$0x7]
        %v1426 = vlaneseq
        %v1427 = vshrl.u32 %v1426, 7
        %v1428 = vsub.s32 0, %v1427
        %v1429 = vrot.slane %v1424, %v1428
        %v1430 = vlaneseq
        %v1431 = vshrl.u32 %v1430, 7
        %v1432 = vsub.s32 1, %v1431
        %v1433 = vrot.slane %v1424, %v1432
        %v1434 = vlaneseq
        %v1435 = vshrl.u32 %v1434, 7
        %v1436 = vsub.s32 2, %v1435
        %v1437 = vrot.slane %v1424, %v1436
        %v1449 = vunpack.c.l.b16 %v1415
        %v1450 = vunpack.c.h.b16 %v1415
        %v1451 = vunpack.c.l.b16 %v1416
        %v1452 = vunpack.c.l.b16 %v1417
        %v1453 = vunpack.c.h.b16 %v1417
        %v1454 = vunpack.c.l.b16 %v1418
        %v1455 = vunpack.c.l.b16 %v1419
        %v1456 = vunpack.c.h.b16 %v1419
        %v1457 = vunpack.c.l.b16 %v1420
        %v1458 = vunpack.c.l.b16 %v1421
        %v1459 = vunpack.c.h.b16 %v1421
        %v1460 = vunpack.c.l.b16 %v1422
        %v1461 = vpack.c.b16 %v1452, %v1449
        %v1462 = vpack.c.b16 %v1453, %v1450
        %v1463 = vpack.c.b16 %v1454, %v1451
        %v1464 = vpack.c.b16 %v1458, %v1455
        %v1465 = vpack.c.b16 %v1459, %v1456
        %v1466 = vpack.c.b16 %v1460, %v1457
        %v1474 = vsel %vm693, %v1413, 0
        %1476 = vmatprep.subr.bf16.mxu0 0
        %1477 = vmatpush1.bf16.msra.mxu0 0
        %1478 = vmatprep.subr.bf16.mxu0 0
        %1479 = vmatpush1.bf16.msra.mxu0 0
        %1480 = vmatprep.subr.bf16.mxu0 0
        %1481 = vmatpush1.bf16.msra.mxu0 0
        %1482 = vmatprep.subr.bf16.mxu0 0
        %1483 = vmatpush1.bf16.msra.mxu0 0
        %1484 = vmatprep.subr.bf16.mxu0 0
        %1485 = vmatpush1.bf16.msra.mxu0 0
        %1486 = vmatprep.subr.bf16.mxu0 0
        %1487 = vmatpush1.bf16.msra.mxu0 0
        %1488 = vmatprep.subr.bf16.mxu0 %v1465
        %1489 = vmatpush1.bf16.msra.mxu0 %v1464
        %1490 = vmatprep.subr.bf16.mxu0 %v1462
        %1491 = vmatpush1.bf16.msra.mxu0 %v1461
        %1492 = vmatprep.subr.bf16.mxu0 0
        %1493 = vmatpush2.bf16.msra.mxu0 0
        %1494 = vmatprep.subr.bf16.mxu0 0
        %1495 = vmatpush2.bf16.msra.mxu0 0
        %1496 = vmatprep.subr.bf16.mxu0 0
        %1497 = vmatpush2.bf16.msra.mxu0 0
        %1498 = vmatprep.subr.bf16.mxu0 0
        %1499 = vmatpush2.bf16.msra.mxu0 0
        %1500 = vmatprep.subr.bf16.mxu0 0
        %1501 = vmatpush2.bf16.msra.mxu0 0
        %1502 = vmatprep.subr.bf16.mxu0 0
        %1503 = vmatpush2.bf16.msra.mxu0 0
        %1504 = vmatprep.subr.bf16.mxu0 0
        %1505 = vmatpush2.bf16.msra.mxu0 0
        %1506 = vmatprep.subr.bf16.mxu0 0
        %1507 = vmatpush2.bf16.msra.mxu0 0
        %1508 = vmatprep.mubr.bf16.mxu0 0
        %1509 = vmatmul.mubr.bf16.gmra.mxu0 %v1474
        %v1510 = vpop.f32.mrf.mxu0
        %v1511 = vadd.f32 %v1429, %v1510
        %v1512 = vpop.f32.mrf.mxu0
        %v1513 = vadd.f32 %v1433, %v1512
        %v1514 = vpop.f32.mrf.mxu0
        %v1515 = vpop.f32.mrf.mxu0
        %1516 = vdwg.mxu0
        %1517 = vmatprep.subr.bf16.mxu0 0
        %1518 = vmatpush1.bf16.msra.mxu0 0
        %1519 = vmatprep.subr.bf16.mxu0 0
        %1520 = vmatpush1.bf16.msra.mxu0 0
        %1521 = vmatprep.subr.bf16.mxu0 0
        %1522 = vmatpush1.bf16.msra.mxu0 0
        %1523 = vmatprep.subr.bf16.mxu0 0
        %1524 = vmatpush1.bf16.msra.mxu0 0
        %1525 = vmatprep.subr.bf16.mxu0 0
        %1526 = vmatpush1.bf16.msra.mxu0 0
        %1527 = vmatprep.subr.bf16.mxu0 0
        %1528 = vmatpush1.bf16.msra.mxu0 0
        %1529 = vmatprep.subr.bf16.mxu0 0
        %1530 = vmatpush1.bf16.msra.mxu0 %v1466
        %1531 = vmatprep.subr.bf16.mxu0 0
        %1532 = vmatpush1.bf16.msra.mxu0 %v1463
        %1533 = vmatprep.subr.bf16.mxu0 0
        %1534 = vmatpush2.bf16.msra.mxu0 0
        %1535 = vmatprep.subr.bf16.mxu0 0
        %1536 = vmatpush2.bf16.msra.mxu0 0
        %1537 = vmatprep.subr.bf16.mxu0 0
        %1538 = vmatpush2.bf16.msra.mxu0 0
        %1539 = vmatprep.subr.bf16.mxu0 0
        %1540 = vmatpush2.bf16.msra.mxu0 0
        %1541 = vmatprep.subr.bf16.mxu0 0
        %1542 = vmatpush2.bf16.msra.mxu0 0
        %1543 = vmatprep.subr.bf16.mxu0 0
        %1544 = vmatpush2.bf16.msra.mxu0 0
        %1545 = vmatprep.subr.bf16.mxu0 0
        %1546 = vmatpush2.bf16.msra.mxu0 0
        %1547 = vmatprep.subr.bf16.mxu0 0
        %1548 = vmatpush2.bf16.msra.mxu0 0
        %1549 = vmatprep.mubr.bf16.mxu0 0
        %1550 = vmatmul.mubr.bf16.gmra.mxu0 %v1474
        %v1551 = vpop.f32.mrf.mxu0
        %v1552 = vadd.f32 %v1437, %v1551
        %v1553 = vpop.f32.mrf.mxu0
        %v1554 = vpop.f32.mrf.mxu0
        %v1555 = vpop.f32.mrf.mxu0
        %1556 = vdwg.mxu0
        %v1557 = vmul.f32 %v1511, %v1513
        %v1558 = vpack.c.bf16 %v1557, %v1557
        %1559 = vmatprep.subr.bf16.mxu0 0
        %1560 = vmatpush1.bf16.msra.mxu0 %v819
        %1561 = vmatprep.subr.bf16.mxu0 0
        %1562 = vmatpush1.bf16.msra.mxu0 %v818
        %1563 = vmatprep.subr.bf16.mxu0 0
        %1564 = vmatpush1.bf16.msra.mxu0 %v817
        %1565 = vmatprep.subr.bf16.mxu0 0
        %1566 = vmatpush1.bf16.msra.mxu0 %v816
        %1567 = vmatprep.subr.bf16.mxu0 0
        %1568 = vmatpush1.bf16.msra.mxu0 %v815
        %1569 = vmatprep.subr.bf16.mxu0 0
        %1570 = vmatpush1.bf16.msra.mxu0 %v814
        %1571 = vmatprep.subr.bf16.mxu0 0
        %1572 = vmatpush1.bf16.msra.mxu0 %v813
        %1573 = vmatprep.subr.bf16.mxu0 0
        %1574 = vmatpush1.bf16.msra.mxu0 %v812
        %1575 = vmatprep.subr.bf16.mxu0 0
        %1576 = vmatpush2.bf16.msra.mxu0 0
        %1577 = vmatprep.subr.bf16.mxu0 0
        %1578 = vmatpush2.bf16.msra.mxu0 0
        %1579 = vmatprep.subr.bf16.mxu0 0
        %1580 = vmatpush2.bf16.msra.mxu0 0
        %1581 = vmatprep.subr.bf16.mxu0 0
        %1582 = vmatpush2.bf16.msra.mxu0 0
        %1583 = vmatprep.subr.bf16.mxu0 0
        %1584 = vmatpush2.bf16.msra.mxu0 0
        %1585 = vmatprep.subr.bf16.mxu0 0
        %1586 = vmatpush2.bf16.msra.mxu0 0
        %1587 = vmatprep.subr.bf16.mxu0 0
        %1588 = vmatpush2.bf16.msra.mxu0 0
        %1589 = vmatprep.subr.bf16.mxu0 0
        %1590 = vmatpush2.bf16.msra.mxu0 0
        %1591 = vmatprep.mubr.bf16.mxu0 0
        %1592 = vmatmul.mubr.bf16.gmra.mxu0 %v1558
        %v1593 = vpop.f32.mrf.mxu0
        %v1594 = vadd.f32 0.0, %v1593
        %v1595 = vpop.f32.mrf.mxu0
        %v1596 = vpop.f32.mrf.mxu0
        %v1597 = vpop.f32.mrf.mxu0
        %1598 = vdwg.mxu0
        %1600 = vrot.lane.b32.xlu0 %v1594, 124
        %v1601 = vpop.permute.xlu0 %1600
        %v1603 = vmax.f32 %v1594, %v1601
        %1604 = vrot.lane.b32.xlu0 %v1594, 120
        %v1605 = vpop.permute.xlu0 %1604
        %v1607 = vmax.f32 %v1603, %v1605
        %1608 = vrot.lane.b32.xlu0 %v1594, 116
        %v1609 = vpop.permute.xlu0 %1608
        %v1611 = vmax.f32 %v1607, %v1609
        %v1612 = vpack.c.bf16 %v1611, %v1611
        %v1614 = vsel %vm882, %v1612, 0
        %1616 = vmatprep.subr.bf16.mxu0 0
        %1617 = vmatpush1.bf16.msra.mxu0 0
        %1618 = vmatprep.subr.bf16.mxu0 0
        %1619 = vmatpush1.bf16.msra.mxu0 0
        %1620 = vmatprep.subr.bf16.mxu0 0
        %1621 = vmatpush1.bf16.msra.mxu0 0
        %1622 = vmatprep.subr.bf16.mxu0 0
        %1623 = vmatpush1.bf16.msra.mxu0 0
        %1624 = vmatprep.subr.bf16.mxu0 0
        %1625 = vmatpush1.bf16.msra.mxu0 0
        %1626 = vmatprep.subr.bf16.mxu0 0
        %1627 = vmatpush1.bf16.msra.mxu0 0
        %1628 = vmatprep.subr.bf16.mxu0 0
        %1629 = vmatpush1.bf16.msra.mxu0 0
        %1630 = vmatprep.subr.bf16.mxu0 0
        %1631 = vmatpush1.bf16.msra.mxu0 %v888
        %1632 = vmatprep.subr.bf16.mxu0 0
        %1633 = vmatpush2.bf16.msra.mxu0 0
        %1634 = vmatprep.subr.bf16.mxu0 0
        %1635 = vmatpush2.bf16.msra.mxu0 0
        %1636 = vmatprep.subr.bf16.mxu0 0
        %1637 = vmatpush2.bf16.msra.mxu0 0
        %1638 = vmatprep.subr.bf16.mxu0 0
        %1639 = vmatpush2.bf16.msra.mxu0 0
        %1640 = vmatprep.subr.bf16.mxu0 0
        %1641 = vmatpush2.bf16.msra.mxu0 0
        %1642 = vmatprep.subr.bf16.mxu0 0
        %1643 = vmatpush2.bf16.msra.mxu0 0
        %1644 = vmatprep.subr.bf16.mxu0 0
        %1645 = vmatpush2.bf16.msra.mxu0 0
        %1646 = vmatprep.subr.bf16.mxu0 0
        %1647 = vmatpush2.bf16.msra.mxu0 0
        %1648 = vmatprep.mubr.bf16.mxu0 0
        %1649 = vmatmul.mubr.bf16.gmra.mxu0 %v1614
        %v1650 = vpop.f32.mrf.mxu0
        %v1651 = vadd.f32 0.0, %v1650
        %v1652 = vpop.f32.mrf.mxu0
        %v1653 = vpop.f32.mrf.mxu0
        %v1654 = vpop.f32.mrf.mxu0
        %1655 = vdwg.mxu0
        %v1656 = vsub.f32 %v1594, %v1651
        %v1657 = vmul.f32 %v1656, 1.442695
        %v1658 = vpow.pop %v1657
        %1660 = vrot.lane.b32.xlu0 %v1658, 124
        %v1661 = vpop.permute.xlu0 %1660
        %v1663 = vadd.f32 %v1658, %v1661
        %1664 = vrot.lane.b32.xlu0 %v1658, 120
        %v1665 = vpop.permute.xlu0 %1664
        %v1667 = vadd.f32 %v1663, %v1665
        %1668 = vrot.lane.b32.xlu0 %v1658, 116
        %v1669 = vpop.permute.xlu0 %1668
        %v1671 = vadd.f32 %v1667, %v1669
        %v1672 = vrcp.pop %v1671
        %v1673 = vpack.c.bf16 %v1672, %v1672
        %v1675 = vsel %vm882, %v1673, 0
        %1677 = vmatprep.subr.bf16.mxu0 0
        %1678 = vmatpush1.bf16.msra.mxu0 0
        %1679 = vmatprep.subr.bf16.mxu0 0
        %1680 = vmatpush1.bf16.msra.mxu0 0
        %1681 = vmatprep.subr.bf16.mxu0 0
        %1682 = vmatpush1.bf16.msra.mxu0 0
        %1683 = vmatprep.subr.bf16.mxu0 0
        %1684 = vmatpush1.bf16.msra.mxu0 0
        %1685 = vmatprep.subr.bf16.mxu0 0
        %1686 = vmatpush1.bf16.msra.mxu0 0
        %1687 = vmatprep.subr.bf16.mxu0 0
        %1688 = vmatpush1.bf16.msra.mxu0 0
        %1689 = vmatprep.subr.bf16.mxu0 0
        %1690 = vmatpush1.bf16.msra.mxu0 0
        %1691 = vmatprep.subr.bf16.mxu0 0
        %1692 = vmatpush1.bf16.msra.mxu0 %v888
        %1693 = vmatprep.subr.bf16.mxu0 0
        %1694 = vmatpush2.bf16.msra.mxu0 0
        %1695 = vmatprep.subr.bf16.mxu0 0
        %1696 = vmatpush2.bf16.msra.mxu0 0
        %1697 = vmatprep.subr.bf16.mxu0 0
        %1698 = vmatpush2.bf16.msra.mxu0 0
        %1699 = vmatprep.subr.bf16.mxu0 0
        %1700 = vmatpush2.bf16.msra.mxu0 0
        %1701 = vmatprep.subr.bf16.mxu0 0
        %1702 = vmatpush2.bf16.msra.mxu0 0
        %1703 = vmatprep.subr.bf16.mxu0 0
        %1704 = vmatpush2.bf16.msra.mxu0 0
        %1705 = vmatprep.subr.bf16.mxu0 0
        %1706 = vmatpush2.bf16.msra.mxu0 0
        %1707 = vmatprep.subr.bf16.mxu0 0
        %1708 = vmatpush2.bf16.msra.mxu0 0
        %1709 = vmatprep.mubr.bf16.mxu0 0
        %1710 = vmatmul.mubr.bf16.gmra.mxu0 %v1675
        %v1711 = vpop.f32.mrf.mxu0
        %v1712 = vadd.f32 0.0, %v1711
        %v1713 = vpop.f32.mrf.mxu0
        %v1714 = vpop.f32.mrf.mxu0
        %v1715 = vpop.f32.mrf.mxu0
        %1716 = vdwg.mxu0
        %v1717 = vmul.f32 %v1658, %v1712
        %v1718 = vpack.c.bf16 %v1717, %v1717
        %v1720 = vsel %vm999, %v1718, 0
        %1722 = vmatprep.subr.bf16.mxu0 0
        %1723 = vmatpush1.bf16.msra.mxu0 0
        %1724 = vmatprep.subr.bf16.mxu0 0
        %1725 = vmatpush1.bf16.msra.mxu0 0
        %1726 = vmatprep.subr.bf16.mxu0 0
        %1727 = vmatpush1.bf16.msra.mxu0 0
        %1728 = vmatprep.subr.bf16.mxu0 0
        %1729 = vmatpush1.bf16.msra.mxu0 0
        %1730 = vmatprep.subr.bf16.mxu0 0
        %1731 = vmatpush1.bf16.msra.mxu0 0
        %1732 = vmatprep.subr.bf16.mxu0 0
        %1733 = vmatpush1.bf16.msra.mxu0 0
        %1734 = vmatprep.subr.bf16.mxu0 0
        %1735 = vmatpush1.bf16.msra.mxu0 0
        %1736 = vmatprep.subr.bf16.mxu0 0
        %1737 = vmatpush1.bf16.msra.mxu0 %v997
        %1738 = vmatprep.subr.bf16.mxu0 0
        %1739 = vmatpush2.bf16.msra.mxu0 0
        %1740 = vmatprep.subr.bf16.mxu0 0
        %1741 = vmatpush2.bf16.msra.mxu0 0
        %1742 = vmatprep.subr.bf16.mxu0 0
        %1743 = vmatpush2.bf16.msra.mxu0 0
        %1744 = vmatprep.subr.bf16.mxu0 0
        %1745 = vmatpush2.bf16.msra.mxu0 0
        %1746 = vmatprep.subr.bf16.mxu0 0
        %1747 = vmatpush2.bf16.msra.mxu0 0
        %1748 = vmatprep.subr.bf16.mxu0 0
        %1749 = vmatpush2.bf16.msra.mxu0 0
        %1750 = vmatprep.subr.bf16.mxu0 0
        %1751 = vmatpush2.bf16.msra.mxu0 0
        %1752 = vmatprep.subr.bf16.mxu0 0
        %1753 = vmatpush2.bf16.msra.mxu0 0
        %1754 = vmatprep.mubr.bf16.mxu0 0
        %1755 = vmatmul.mubr.bf16.gmra.mxu0 %v1720
        %v1756 = vpop.f32.mrf.mxu0
        %v1757 = vadd.f32 0.0, %v1756
        %v1758 = vpop.f32.mrf.mxu0
        %v1759 = vpop.f32.mrf.mxu0
        %v1760 = vpop.f32.mrf.mxu0
        %1761 = vdwg.mxu0
        %v1762 = vmul.f32 %v1757, %v1552
        %v1763 = vpack.c.bf16 %v1762, %v1762
        %1764 = vmatprep.subr.bf16.mxu0 0
        %1765 = vmatpush1.bf16.msra.mxu0 %v1084
        %1766 = vmatprep.subr.bf16.mxu0 0
        %1767 = vmatpush1.bf16.msra.mxu0 %v1083
        %1768 = vmatprep.subr.bf16.mxu0 0
        %1769 = vmatpush1.bf16.msra.mxu0 %v1082
        %1770 = vmatprep.subr.bf16.mxu0 0
        %1771 = vmatpush1.bf16.msra.mxu0 %v1081
        %1772 = vmatprep.subr.bf16.mxu0 0
        %1773 = vmatpush1.bf16.msra.mxu0 %v1080
        %1774 = vmatprep.subr.bf16.mxu0 0
        %1775 = vmatpush1.bf16.msra.mxu0 %v1079
        %1776 = vmatprep.subr.bf16.mxu0 0
        %1777 = vmatpush1.bf16.msra.mxu0 %v1078
        %1778 = vmatprep.subr.bf16.mxu0 0
        %1779 = vmatpush1.bf16.msra.mxu0 %v1077
        %1780 = vmatprep.subr.bf16.mxu0 0
        %1781 = vmatpush2.bf16.msra.mxu0 0
        %1782 = vmatprep.subr.bf16.mxu0 0
        %1783 = vmatpush2.bf16.msra.mxu0 0
        %1784 = vmatprep.subr.bf16.mxu0 0
        %1785 = vmatpush2.bf16.msra.mxu0 0
        %1786 = vmatprep.subr.bf16.mxu0 0
        %1787 = vmatpush2.bf16.msra.mxu0 0
        %1788 = vmatprep.subr.bf16.mxu0 0
        %1789 = vmatpush2.bf16.msra.mxu0 0
        %1790 = vmatprep.subr.bf16.mxu0 0
        %1791 = vmatpush2.bf16.msra.mxu0 0
        %1792 = vmatprep.subr.bf16.mxu0 0
        %1793 = vmatpush2.bf16.msra.mxu0 0
        %1794 = vmatprep.subr.bf16.mxu0 0
        %1795 = vmatpush2.bf16.msra.mxu0 0
        %1796 = vmatprep.mubr.bf16.mxu0 0
        %1797 = vmatmul.mubr.bf16.gmra.mxu0 %v1763
        %v1798 = vpop.f32.mrf.mxu0
        %v1799 = vadd.f32 0.0, %v1798
        %v1800 = vpop.f32.mrf.mxu0
        %v1801 = vpop.f32.mrf.mxu0
        %v1802 = vpop.f32.mrf.mxu0
        %1803 = vdwg.mxu0
        %v1804 = vpack.c.bf16 %v1799, %v1799
        %s1805 = scalar_lea.vmem %s3, 16
        %v1806 = vld [vmem:[%s1805] sm:$0xf]
        %v1807 = vld [vmem:[%s1805 + $0x4] sm:$0xf]
        %v1808 = vld [vmem:[%s1805 + $0x8] sm:$0xf]
        %v1809 = vld [vmem:[%s1805 + $0xc] sm:$0xf]
        %s1810 = scalar_lea.vmem %s4, 1
        %v1811 = vld [vmem:[%s1810] sm:$0x1]
        %v1813 = vlaneseq
        %v1814 = vshrl.u32 %v1813, 7
        %v1815 = vsub.s32 0, %v1814
        %v1816 = vrot.slane %v1811, %v1815
        %v1822 = vunpack.c.l.b16 %v1806
        %v1823 = vunpack.c.l.b16 %v1807
        %v1824 = vunpack.c.l.b16 %v1808
        %v1825 = vunpack.c.l.b16 %v1809
        %v1826 = vpack.c.b16 %v1823, %v1822
        %v1827 = vpack.c.b16 %v1825, %v1824
        %v1831 = vsel %vm693, %v1804, 0
        %1833 = vmatprep.subr.bf16.mxu0 0
        %1834 = vmatpush1.bf16.msra.mxu0 0
        %1835 = vmatprep.subr.bf16.mxu0 0
        %1836 = vmatpush1.bf16.msra.mxu0 0
        %1837 = vmatprep.subr.bf16.mxu0 0
        %1838 = vmatpush1.bf16.msra.mxu0 0
        %1839 = vmatprep.subr.bf16.mxu0 0
        %1840 = vmatpush1.bf16.msra.mxu0 0
        %1841 = vmatprep.subr.bf16.mxu0 0
        %1842 = vmatpush1.bf16.msra.mxu0 0
        %1843 = vmatprep.subr.bf16.mxu0 0
        %1844 = vmatpush1.bf16.msra.mxu0 0
        %1845 = vmatprep.subr.bf16.mxu0 0
        %1846 = vmatpush1.bf16.msra.mxu0 %v1827
        %1847 = vmatprep.subr.bf16.mxu0 0
        %1848 = vmatpush1.bf16.msra.mxu0 %v1826
        %1849 = vmatprep.subr.bf16.mxu0 0
        %1850 = vmatpush2.bf16.msra.mxu0 0
        %1851 = vmatprep.subr.bf16.mxu0 0
        %1852 = vmatpush2.bf16.msra.mxu0 0
        %1853 = vmatprep.subr.bf16.mxu0 0
        %1854 = vmatpush2.bf16.msra.mxu0 0
        %1855 = vmatprep.subr.bf16.mxu0 0
        %1856 = vmatpush2.bf16.msra.mxu0 0
        %1857 = vmatprep.subr.bf16.mxu0 0
        %1858 = vmatpush2.bf16.msra.mxu0 0
        %1859 = vmatprep.subr.bf16.mxu0 0
        %1860 = vmatpush2.bf16.msra.mxu0 0
        %1861 = vmatprep.subr.bf16.mxu0 0
        %1862 = vmatpush2.bf16.msra.mxu0 0
        %1863 = vmatprep.subr.bf16.mxu0 0
        %1864 = vmatpush2.bf16.msra.mxu0 0
        %1865 = vmatprep.mubr.bf16.mxu0 0
        %1866 = vmatmul.mubr.bf16.gmra.mxu0 %v1831
        %v1867 = vpop.f32.mrf.mxu0
        %v1868 = vadd.f32 %v1816, %v1867
        %v1869 = vpop.f32.mrf.mxu0
        %v1870 = vpop.f32.mrf.mxu0
        %v1871 = vpop.f32.mrf.mxu0
        %1872 = vdwg.mxu0
        %s1873 = scalar_lea.vmem %s5, 1
        %v1874 = vld [vmem:[%s1873] sm:$0x1]
        %s1875 = scalar_lea.vmem %s6, 1
        %v1876 = vld [vmem:[%s1875] sm:$0x1]
        %v1877 = vsel %vm693, %v1868, 0.0
        %1878 = vadd.xlane.f32.xlu0 %v1877
        %v1879 = vpop.xlane.xlu0 %1878
        %v1880 = vmul.f32 %v1879, %v1205
        %v1881 = vsub.f32 %v1868, %v1880
        %v1882 = vmul.f32 %v1881, %v1881
        %v1883 = vsel %vm693, %v1882, 0.0
        %1884 = vadd.xlane.f32.xlu0 %v1883
        %v1885 = vpop.xlane.xlu0 %1884
        %v1886 = vmul.f32 %v1885, %v1205
        %v1887 = vadd.f32 %v1886, 1e-05
        %v1888 = vrsqrt.pop %v1887
        %v1889 = vmul.f32 %v1881, %v1888
        %v1891 = vlaneseq
        %v1892 = vshrl.u32 %v1891, 7
        %v1893 = vsub.s32 0, %v1892
        %v1894 = vrot.slane %v1874, %v1893
        %v1896 = vmul.f32 %v1889, %v1894
        %v1898 = vlaneseq
        %v1899 = vshrl.u32 %v1898, 7
        %v1900 = vsub.s32 0, %v1899
        %v1901 = vrot.slane %v1876, %v1900
        %v1903 = vadd.f32 %v1896, %v1901
        %v1904 = vadd.f32 %v1412, %v1903
        %v1905 = vpack.c.bf16 %v1904, %v1904
        %s1906 = scalar_lea.vmem %s7, 16
        %v1907 = vld [vmem:[%s1906] sm:$0xf]
        %v1908 = vld [vmem:[%s1906 + $0x4] sm:$0xf]
        %v1909 = vld [vmem:[%s1906 + $0x8] sm:$0xf]
        %v1910 = vld [vmem:[%s1906 + $0xc] sm:$0xf]
        %s1911 = scalar_lea.vmem %s8, 1
        %v1912 = vld [vmem:[%s1911] sm:$0x1]
        %v1914 = vlaneseq
        %v1915 = vshrl.u32 %v1914, 7
        %v1916 = vsub.s32 0, %v1915
        %v1917 = vrot.slane %v1912, %v1916
        %v1923 = vunpack.c.l.b16 %v1907
        %v1924 = vunpack.c.l.b16 %v1908
        %v1925 = vunpack.c.l.b16 %v1909
        %v1926 = vunpack.c.l.b16 %v1910
        %v1927 = vpack.c.b16 %v1924, %v1923
        %v1928 = vpack.c.b16 %v1926, %v1925
        %v1932 = vsel %vm693, %v1905, 0
        %1934 = vmatprep.subr.bf16.mxu0 0
        %1935 = vmatpush1.bf16.msra.mxu0 0
        %1936 = vmatprep.subr.bf16.mxu0 0
        %1937 = vmatpush1.bf16.msra.mxu0 0
        %1938 = vmatprep.subr.bf16.mxu0 0
        %1939 = vmatpush1.bf16.msra.mxu0 0
        %1940 = vmatprep.subr.bf16.mxu0 0
        %1941 = vmatpush1.bf16.msra.mxu0 0
        %1942 = vmatprep.subr.bf16.mxu0 0
        %1943 = vmatpush1.bf16.msra.mxu0 0
        %1944 = vmatprep.subr.bf16.mxu0 0
        %1945 = vmatpush1.bf16.msra.mxu0 0
        %1946 = vmatprep.subr.bf16.mxu0 0
        %1947 = vmatpush1.bf16.msra.mxu0 %v1928
        %1948 = vmatprep.subr.bf16.mxu0 0
        %1949 = vmatpush1.bf16.msra.mxu0 %v1927
        %1950 = vmatprep.subr.bf16.mxu0 0
        %1951 = vmatpush2.bf16.msra.mxu0 0
        %1952 = vmatprep.subr.bf16.mxu0 0
        %1953 = vmatpush2.bf16.msra.mxu0 0
        %1954 = vmatprep.subr.bf16.mxu0 0
        %1955 = vmatpush2.bf16.msra.mxu0 0
        %1956 = vmatprep.subr.bf16.mxu0 0
        %1957 = vmatpush2.bf16.msra.mxu0 0
        %1958 = vmatprep.subr.bf16.mxu0 0
        %1959 = vmatpush2.bf16.msra.mxu0 0
        %1960 = vmatprep.subr.bf16.mxu0 0
        %1961 = vmatpush2.bf16.msra.mxu0 0
        %1962 = vmatprep.subr.bf16.mxu0 0
        %1963 = vmatpush2.bf16.msra.mxu0 0
        %1964 = vmatprep.subr.bf16.mxu0 0
        %1965 = vmatpush2.bf16.msra.mxu0 0
        %1966 = vmatprep.mubr.bf16.mxu0 0
        %1967 = vmatmul.mubr.bf16.gmra.mxu0 %v1932
        %v1968 = vpop.f32.mrf.mxu0
        %v1969 = vadd.f32 %v1917, %v1968
        %v1970 = vpop.f32.mrf.mxu0
        %v1971 = vpop.f32.mrf.mxu0
        %v1972 = vpop.f32.mrf.mxu0
        %1973 = vdwg.mxu0
        %v1974 = vmax.f32 %v1969, 0.0
        %v1975 = vpack.c.bf16 %v1974, %v1974
        %s1976 = scalar_lea.vmem %s9, 32
        %v1977 = vld [vmem:[%s1976] sm:$0xf]
        %v1978 = vld [vmem:[%s1976 + $0x4] sm:$0xf]
        %v1979 = vld [vmem:[%s1976 + $0x8] sm:$0xf]
        %v1980 = vld [vmem:[%s1976 + $0xc] sm:$0xf]
        %v1981 = vld [vmem:[%s1976 + $0x10] sm:$0xf]
        %v1982 = vld [vmem:[%s1976 + $0x14] sm:$0xf]
        %v1983 = vld [vmem:[%s1976 + $0x18] sm:$0xf]
        %v1984 = vld [vmem:[%s1976 + $0x1c] sm:$0xf]
        %s1985 = scalar_lea.vmem %s10, 1
        %v1986 = vld [vmem:[%s1985] sm:$0x1]
        %v1988 = vlaneseq
        %v1989 = vshrl.u32 %v1988, 7
        %v1990 = vsub.s32 0, %v1989
        %v1991 = vrot.slane %v1986, %v1990
        %v2001 = vunpack.c.l.b16 %v1977
        %v2002 = vunpack.c.l.b16 %v1978
        %v2003 = vunpack.c.l.b16 %v1979
        %v2004 = vunpack.c.l.b16 %v1980
        %v2005 = vunpack.c.l.b16 %v1981
        %v2006 = vunpack.c.l.b16 %v1982
        %v2007 = vunpack.c.l.b16 %v1983
        %v2008 = vunpack.c.l.b16 %v1984
        %v2009 = vpack.c.b16 %v2002, %v2001
        %v2010 = vpack.c.b16 %v2004, %v2003
        %v2011 = vpack.c.b16 %v2006, %v2005
        %v2012 = vpack.c.b16 %v2008, %v2007
        %v2018 = vsel %vm1339, %v1975, 0
        %2020 = vmatprep.subr.bf16.mxu0 0
        %2021 = vmatpush1.bf16.msra.mxu0 0
        %2022 = vmatprep.subr.bf16.mxu0 0
        %2023 = vmatpush1.bf16.msra.mxu0 0
        %2024 = vmatprep.subr.bf16.mxu0 0
        %2025 = vmatpush1.bf16.msra.mxu0 0
        %2026 = vmatprep.subr.bf16.mxu0 0
        %2027 = vmatpush1.bf16.msra.mxu0 0
        %2028 = vmatprep.subr.bf16.mxu0 0
        %2029 = vmatpush1.bf16.msra.mxu0 %v2012
        %2030 = vmatprep.subr.bf16.mxu0 0
        %2031 = vmatpush1.bf16.msra.mxu0 %v2011
        %2032 = vmatprep.subr.bf16.mxu0 0
        %2033 = vmatpush1.bf16.msra.mxu0 %v2010
        %2034 = vmatprep.subr.bf16.mxu0 0
        %2035 = vmatpush1.bf16.msra.mxu0 %v2009
        %2036 = vmatprep.subr.bf16.mxu0 0
        %2037 = vmatpush2.bf16.msra.mxu0 0
        %2038 = vmatprep.subr.bf16.mxu0 0
        %2039 = vmatpush2.bf16.msra.mxu0 0
        %2040 = vmatprep.subr.bf16.mxu0 0
        %2041 = vmatpush2.bf16.msra.mxu0 0
        %2042 = vmatprep.subr.bf16.mxu0 0
        %2043 = vmatpush2.bf16.msra.mxu0 0
        %2044 = vmatprep.subr.bf16.mxu0 0
        %2045 = vmatpush2.bf16.msra.mxu0 0
        %2046 = vmatprep.subr.bf16.mxu0 0
        %2047 = vmatpush2.bf16.msra.mxu0 0
        %2048 = vmatprep.subr.bf16.mxu0 0
        %2049 = vmatpush2.bf16.msra.mxu0 0
        %2050 = vmatprep.subr.bf16.mxu0 0
        %2051 = vmatpush2.bf16.msra.mxu0 0
        %2052 = vmatprep.mubr.bf16.mxu0 0
        %2053 = vmatmul.mubr.bf16.gmra.mxu0 %v2018
        %v2054 = vpop.f32.mrf.mxu0
        %v2055 = vadd.f32 %v1991, %v2054
        %v2056 = vpop.f32.mrf.mxu0
        %v2057 = vpop.f32.mrf.mxu0
        %v2058 = vpop.f32.mrf.mxu0
        %2059 = vdwg.mxu0
        %s2060 = scalar_lea.vmem %s11, 1
        %v2061 = vld [vmem:[%s2060] sm:$0x1]
        %s2062 = scalar_lea.vmem %s12, 1
        %v2063 = vld [vmem:[%s2062] sm:$0x1]
        %v2064 = vsel %vm693, %v2055, 0.0
        %2065 = vadd.xlane.f32.xlu0 %v2064
        %v2066 = vpop.xlane.xlu0 %2065
        %v2067 = vmul.f32 %v2066, %v1205
        %v2068 = vsub.f32 %v2055, %v2067
        %v2069 = vmul.f32 %v2068, %v2068
        %v2070 = vsel %vm693, %v2069, 0.0
        %2071 = vadd.xlane.f32.xlu0 %v2070
        %v2072 = vpop.xlane.xlu0 %2071
        %v2073 = vmul.f32 %v2072, %v1205
        %v2074 = vadd.f32 %v2073, 1e-05
        %v2075 = vrsqrt.pop %v2074
        %v2076 = vmul.f32 %v2068, %v2075
        %v2078 = vlaneseq
        %v2079 = vshrl.u32 %v2078, 7
        %v2080 = vsub.s32 0, %v2079
        %v2081 = vrot.slane %v2061, %v2080
        %v2083 = vmul.f32 %v2076, %v2081
        %v2085 = vlaneseq
        %v2086 = vshrl.u32 %v2085, 7
        %v2087 = vsub.s32 0, %v2086
        %v2088 = vrot.slane %v2063, %v2087
        %v2090 = vadd.f32 %v2083, %v2088
        %v2091 = vadd.f32 %v1412, %v2090
        %v2092 = vld [vmem:[%s13] sm:$0x1]
        %v2093 = vld [vmem:[%s14] sm:$0x1]
        %v2094 = vsel %vm693, %v2091, 0.0
        %2095 = vadd.xlane.f32.xlu0 %v2094
        %v2096 = vpop.xlane.xlu0 %2095
        %v2097 = vmul.f32 %v2096, %v1205
        %v2098 = vsub.f32 %v2091, %v2097
        %v2099 = vmul.f32 %v2098, %v2098
        %v2100 = vsel %vm693, %v2099, 0.0
        %2101 = vadd.xlane.f32.xlu0 %v2100
        %v2102 = vpop.xlane.xlu0 %2101
        %v2103 = vmul.f32 %v2102, %v1205
        %v2104 = vadd.f32 %v2103, 1e-05
        %v2105 = vrsqrt.pop %v2104
        %v2106 = vmul.f32 %v2098, %v2105
        %v2108 = vlaneseq
        %v2109 = vshrl.u32 %v2108, 7
        %v2110 = vsub.s32 0, %v2109
        %v2111 = vrot.slane %v2092, %v2110
        %v2113 = vmul.f32 %v2106, %v2111
        %v2115 = vlaneseq
        %v2116 = vshrl.u32 %v2115, 7
        %v2117 = vsub.s32 0, %v2116
        %v2118 = vrot.slane %v2093, %v2117
        %v2120 = vadd.f32 %v2113, %v2118
        %2121 = vst.msk [vmem:[%s593] sm:$0xff] %vm693, %v2120
        %s2122 = sand.u32 %s445, 1
        %s2123 = scalar_lea.sflag [#allocation3], %s2122
        %s2124 = sand.u32 %s445, 1
        %s2125 = smul.addr %s2124, 8
        %s2126 = scalar_lea.vmem [#allocation2], %s2125
        // Predicated region
        $region97: #{tpu_custom_call.1} parent=95 // pred_check
          %p2127 = pneg %p455
        $region98: #{tpu_custom_call.1} parent=95 // pred_check_branch
          %2129 = sbr.rel (%p2127) target = $region100
        $region99: #{tpu_custom_call.1} parent=95 // pred_region
          %s2131 = ssub.s32 128, 128
          %2132 = vsyncadd %s2123, %s2131
          %s2133 = smul.addr %s33, 128
          %s2134 = scalar_lea.hbm %s19, %s2133
          %s2136 = sshll.u32 %s2126, 4
          %s2137 = int_to_ptr.vmem [resolvable:$true] %s2136
          %2139 = dma.vmem_to_hbm [thread:$0]  %s2137, 128, %s2134, %s2123
        $region100: #{tpu_custom_call.1} parent=95 // pred_fallthru
          _
      $region96: #{tpu_custom_call.1} parent=5 // pred_fallthru
        _
      %p2140 = scmp.le.s32.totalorder 2, %s28
      // Predicated region
      $region101: #{tpu_custom_call.1} parent=5 // pred_check
        %p2141 = pneg %p2140
      $region102: #{tpu_custom_call.1} parent=5 // pred_check_branch
        %2143 = sbr.rel (%p2141) target = $region104
      $region103: #{tpu_custom_call.1} parent=5 // pred_region
        %s2144 = ssub.s32 %s28, 2
        // Predicated region
        $region105: #{tpu_custom_call.1} parent=103 // pred_check
          %p2145 = pneg %p461
        $region106: #{tpu_custom_call.1} parent=103 // pred_check_branch
          %2147 = sbr.rel (%p2145) target = $region108
        $region107: #{tpu_custom_call.1} parent=103 // pred_region
          %s2148 = sand.u32 %s446, 1
          %s2149 = scalar_lea.sflag [#allocation3], %s2148
          %s2150 = sand.u32 %s446, 1
          %s2151 = smul.addr %s2150, 8
          %s2152 = scalar_lea.vmem [#allocation2], %s2151
          %2153 = dma.done %s2149, 128
        $region108: #{tpu_custom_call.1} parent=103 // pred_fallthru
          _
      $region104: #{tpu_custom_call.1} parent=5 // pred_fallthru
        _
    $region6: #{tpu_custom_call.1} parent=1 // loop_footer
      %s32 = sadd.s32 1, %s28
    $region7: #{tpu_custom_call.1} parent=1 // loop_footer_branch
      %27 = sbr.rel target = $region3
    $region8: #{tpu_custom_call.1} parent=1 // loop_exit
      _
    %2154 = vsyncpa [#allocation3], 1
    %s2155 = scalar_lea.sflag [#allocation3], 1
    %2156 = vsyncpa %s2155, 1

</llo_original>
